<compile_context>
chip_gen: v5e
topology: v5e:2x2
jax: 0.10.0
libtpu: 0.0.40
codegen_flags: <defaults>
</compile_context>

<pallas_src>
import jax
import jax.numpy as jnp
import numpy as np
from jax.experimental import pallas as pl
from jax.experimental.pallas import tpu as pltpu

LN_EPS = 1e-5
_INV_SQRT2 = 0.7071067811865475


def _gelu_exact(x):
    # nn.GELU() default = exact erf formulation
    return 0.5 * x * (1.0 + jax.lax.erf(x * _INV_SQRT2))


def _layernorm(x, gamma, beta):
    # x: (M, H); gamma/beta: (1, H); normalize over last axis (matches nn.LayerNorm(H))
    mu = jnp.mean(x, axis=-1, keepdims=True)
    var = jnp.mean((x - mu) ** 2, axis=-1, keepdims=True)
    return (x - mu) * jax.lax.rsqrt(var + LN_EPS) * gamma + beta


def _mixer_kernel(x_ref,
                  g1_ref, be1_ref,                      # layernorm1
                  tw1_ref, tb1_ref, tw2_ref, tb2_ref,   # MLP_token (pre-transposed)
                  g2_ref, be2_ref,                      # layernorm2
                  cw1_ref, cb1_ref, cw2_ref, cb2_ref,   # MLP_channel
                  out_ref):
    Bt, T, H = x_ref.shape
    x = x_ref[...].astype(jnp.float32).reshape(Bt * T, H)      # (Bt*T, H)

    # ---- token branch:  y = MLP_token(LN1(x).T).T  — computed WITHOUT transposes ----
    y = _layernorm(x, g1_ref[...], be1_ref[...])                # (Bt*T, H) f32
    w1 = tw1_ref[...]                                           # (Ti, T)
    b1 = tb1_ref[...]                                           # (Ti, 1)
    w2 = tw2_ref[...]                                           # (T, Ti)
    b2 = tb2_ref[...]                                           # (T, 1)
    parts = []
    for b in range(Bt):                                         # static unroll (Bt small)
        yb = y[b * T:(b + 1) * T, :]                            # (T, H), static slice
        h = jnp.dot(w1, yb.astype(w1.dtype),
                    preferred_element_type=jnp.float32) + b1    # (Ti, H)
        h = _gelu_exact(h)
        yb = jnp.dot(w2, h.astype(w2.dtype),
                     preferred_element_type=jnp.float32) + b2   # (T, H)
        parts.append(yb)
    y_tok = parts[0] if Bt == 1 else jnp.concatenate(parts, axis=0)   # (Bt*T, H)

    # ---- channel branch:  z = MLP_channel(LN2(x + y)) ----
    xy = x + y_tok
    z = _layernorm(xy, g2_ref[...], be2_ref[...])
    h2 = jnp.dot(z.astype(cw1_ref.dtype), cw1_ref[...],
                 preferred_element_type=jnp.float32) + cb1_ref[...]   # (Bt*T, Hi)
    h2 = _gelu_exact(h2)
    z = jnp.dot(h2.astype(cw2_ref.dtype), cw2_ref[...],
                preferred_element_type=jnp.float32) + cb2_ref[...]    # (Bt*T, H)

    out_ref[...] = (xy + z).reshape(Bt, T, H).astype(out_ref.dtype)   # x + y + z


def _pick_block_batch(B, T, H, Ti, Hi):
    """Largest divisor of B whose per-step f32 activation working set stays modest,
    preferring Bt*T >= 512 for MXU occupancy.  (On multi-TensorCore chips you may
    also want B // Bt >= num_cores to keep both cores fed.)"""
    budget = 8 * 1024 * 1024
    best = 1
    for bt in range(1, B + 1):
        if B % bt:
            continue
        act_bytes = 4 * bt * T * (4 * H + Hi) + 4 * bt * max(T, Ti) * H
        if act_bytes > budget:
            break
        best = bt
        if bt * T >= 512:
            break
    return best


def mixer_layer(x, params, *, block_batch=None, use_bf16=False):
    """x: (B, T, H) float32. params: dict of weights (see init_params)."""
    B, T, H = x.shape
    Ti = params["tw1"].shape[0]
    Hi = params["cw1"].shape[1]

    Bt = _pick_block_batch(B, T, H, Ti, Hi) if block_batch is None else block_batch
    assert B % Bt == 0, "block_batch must divide the batch"

    wdt = jnp.bfloat16 if use_bf16 else jnp.float32
    tw1 = params["tw1"].astype(wdt)
    tw2 = params["tw2"].astype(wdt)
    cw1 = params["cw1"].astype(wdt)
    cw2 = params["cw2"].astype(wdt)

    operands = (x,
                params["g1"], params["be1"],
                tw1, params["tb1"], tw2, params["tb2"],
                params["g2"], params["be2"],
                cw1, params["cb1"], cw2, params["cb2"])

    def build(single_buffer_weights):
        def wspec(shape):
            kwargs = {}
            if single_buffer_weights:
                # Constant index map -> no need to double-buffer the weights.
                kwargs["pipeline_mode"] = pl.Buffered(1)
            return pl.BlockSpec(shape, lambda b: (0,) * len(shape), **kwargs)

        in_specs = [
            pl.BlockSpec((Bt, T, H), lambda b: (b, 0, 0)),   # x: Bt batch elems / step
            wspec((1, H)), wspec((1, H)),                    # g1, be1
            wspec((Ti, T)), wspec((Ti, 1)),                  # tw1ᵗ, tb1ᵗ
            wspec((T, Ti)), wspec((T, 1)),                   # tw2ᵗ, tb2ᵗ
            wspec((1, H)), wspec((1, H)),                    # g2, be2
            wspec((H, Hi)), wspec((1, Hi)),                  # cw1, cb1
            wspec((Hi, H)), wspec((1, H)),                   # cw2, cb2
        ]
        return pl.pallas_call(
            _mixer_kernel,
            out_shape=jax.ShapeDtypeStruct((B, T, H), x.dtype),
            grid_spec=pltpu.PrefetchScalarGridSpec(
                num_scalar_prefetch=0,
                grid=(B // Bt,),
                in_specs=in_specs,
                out_specs=pl.BlockSpec((Bt, T, H), lambda b: (b, 0, 0)),
            ),
            compiler_params=pltpu.CompilerParams(
                dimension_semantics=("parallel",),
                vmem_limit_bytes=64 * 1024 * 1024,
            ),
        )

    try:
        return build(single_buffer_weights=True)(*operands)
    except Exception:
        # Some Pallas versions reject pl.Buffered(1); fall back to default
        # (double-buffered) weight specs — numerically identical.
        return build(single_buffer_weights=False)(*operands)


def init_params(key, hidden_dim, hidden_inter_dim, token_dim, token_inter_dim):
    ks = jax.random.split(key, 8)
    s = 0.02
    f = jnp.float32
    return {
        # layernorm1 / layernorm2 (affine)
        "g1": jnp.ones((1, hidden_dim), f),
        "be1": jnp.zeros((1, hidden_dim), f),
        "g2": jnp.ones((1, hidden_dim), f),
        "be2": jnp.zeros((1, hidden_dim), f),
        # MLP_token — stored PRE-TRANSPOSED for the kernel (== PyTorch weight layout):
        #   tw1: (token_inter_dim, token_dim), tw2: (token_dim, token_inter_dim)
        #   biases stored as columns so they broadcast over the H lane axis.
        "tw1": s * jax.random.normal(ks[0], (token_inter_dim, token_dim), f),
        "tb1": s * jax.random.normal(ks[1], (token_inter_dim, 1), f),
        "tw2": s * jax.random.normal(ks[2], (token_dim, token_inter_dim), f),
        "tb2": s * jax.random.normal(ks[3], (token_dim, 1), f),
        # MLP_channel — stored as (in, out) so the kernel computes z @ W + b.
        "cw1": s * jax.random.normal(ks[4], (hidden_dim, hidden_inter_dim), f),
        "cb1": s * jax.random.normal(ks[5], (1, hidden_inter_dim), f),
        "cw2": s * jax.random.normal(ks[6], (hidden_inter_dim, hidden_dim), f),
        "cb2": s * jax.random.normal(ks[7], (1, hidden_dim), f),
    }


def mixer_layer_ref(x, p):
    """Pure-JAX reference of the PyTorch forward (dropout = identity)."""
    def ln(v, g, b):
        mu = jnp.mean(v, axis=-1, keepdims=True)
        var = jnp.mean((v - mu) ** 2, axis=-1, keepdims=True)
        return (v - mu) * jax.lax.rsqrt(var + LN_EPS) * g + b

    y = ln(x, p["g1"], p["be1"])
    yt = jnp.swapaxes(y, 1, 2)                              # (B, H, T)
    yt = _gelu_exact(yt @ p["tw1"].T + p["tb1"].T)          # (B, H, Ti)
    yt = yt @ p["tw2"].T + p["tb2"].T                       # (B, H, T)
    y = jnp.swapaxes(yt, 1, 2)                              # (B, T, H)
    z = ln(x + y, p["g2"], p["be2"])
    z = _gelu_exact(z @ p["cw1"] + p["cb1"]) @ p["cw2"] + p["cb2"]
    return x + y + z


if __name__ == "__main__":
    # small shapes consistent with the module: x is (B, token_dim, hidden_dim)
    B, token_dim, hidden_dim = 2, 8, 32
    token_inter_dim, hidden_inter_dim = 16, 64
    # dropout_ratio = 0.0  -> dropout is identity at inference

    key = jax.random.PRNGKey(0)
    kx, kp = jax.random.split(key)
    x = jax.random.normal(kx, (B, token_dim, hidden_dim), jnp.float32)
    params = init_params(kp, hidden_dim, hidden_inter_dim, token_dim, token_inter_dim)

    ref = jax.block_until_ready(mixer_layer_ref(x, params))

    # f32 path (matches the nn.Module numerics)
    out = jax.block_until_ready(mixer_layer(x, params))
    np.testing.assert_allclose(np.asarray(out), np.asarray(ref), rtol=1e-4, atol=1e-4)

    # bf16 matmul-operand path (perf option for v6e/v7x) — f32 accumulation,
    # compared at a correspondingly looser tolerance.
    out_bf16 = jax.block_until_ready(mixer_layer(x, params, use_bf16=True))
    np.testing.assert_allclose(np.asarray(out_bf16), np.asarray(ref), rtol=5e-2, atol=5e-2)

    print("KERNEL_OK")
</pallas_src>

<mosaic_0001>
module attributes {stable_mosaic.version = 11 : i64} {
  func.func @_mixer_kernel(%arg0: i32, %arg1: memref<2x8x32xf32, #tpu.memory_space<vmem>>, %arg2: memref<1x32xf32, #tpu.memory_space<vmem>>, %arg3: memref<1x32xf32, #tpu.memory_space<vmem>>, %arg4: memref<16x8xf32, #tpu.memory_space<vmem>>, %arg5: memref<16x1xf32, #tpu.memory_space<vmem>>, %arg6: memref<8x16xf32, #tpu.memory_space<vmem>>, %arg7: memref<8x1xf32, #tpu.memory_space<vmem>>, %arg8: memref<1x32xf32, #tpu.memory_space<vmem>>, %arg9: memref<1x32xf32, #tpu.memory_space<vmem>>, %arg10: memref<32x64xf32, #tpu.memory_space<vmem>>, %arg11: memref<1x64xf32, #tpu.memory_space<vmem>>, %arg12: memref<64x32xf32, #tpu.memory_space<vmem>>, %arg13: memref<1x32xf32, #tpu.memory_space<vmem>>, %arg14: memref<2x8x32xf32, #tpu.memory_space<vmem>>) attributes {dimension_semantics = [#tpu.dimension_semantics<parallel>], iteration_bounds = array<i64: 1>, scalar_prefetch = 0 : i64, scratch_operands = 0 : i64, tpu.core_type = #tpu.core_type<tc>, window_params = [{transform_indices = @transform_0, window_bounds = array<i64: 2, 8, 32>}, {pipeline_mode = #tpu.pipeline_mode<synchronous>, transform_indices = @transform_1, window_bounds = array<i64: 1, 32>}, {pipeline_mode = #tpu.pipeline_mode<synchronous>, transform_indices = @transform_2, window_bounds = array<i64: 1, 32>}, {pipeline_mode = #tpu.pipeline_mode<synchronous>, transform_indices = @transform_3, window_bounds = array<i64: 16, 8>}, {pipeline_mode = #tpu.pipeline_mode<synchronous>, transform_indices = @transform_4, window_bounds = array<i64: 16, 1>}, {pipeline_mode = #tpu.pipeline_mode<synchronous>, transform_indices = @transform_5, window_bounds = array<i64: 8, 16>}, {pipeline_mode = #tpu.pipeline_mode<synchronous>, transform_indices = @transform_6, window_bounds = array<i64: 8, 1>}, {pipeline_mode = #tpu.pipeline_mode<synchronous>, transform_indices = @transform_7, window_bounds = array<i64: 1, 32>}, {pipeline_mode = #tpu.pipeline_mode<synchronous>, transform_indices = @transform_8, window_bounds = array<i64: 1, 32>}, {pipeline_mode = #tpu.pipeline_mode<synchronous>, transform_indices = @transform_9, window_bounds = array<i64: 32, 64>}, {pipeline_mode = #tpu.pipeline_mode<synchronous>, transform_indices = @transform_10, window_bounds = array<i64: 1, 64>}, {pipeline_mode = #tpu.pipeline_mode<synchronous>, transform_indices = @transform_11, window_bounds = array<i64: 64, 32>}, {pipeline_mode = #tpu.pipeline_mode<synchronous>, transform_indices = @transform_12, window_bounds = array<i64: 1, 32>}, {transform_indices = @transform_13, window_bounds = array<i64: 2, 8, 32>}]} {
    %c0 = arith.constant 0 : index
    %c0_0 = arith.constant 0 : index
    %c0_1 = arith.constant 0 : index
    %0 = vector.load %arg1[%c0, %c0_0, %c0_1] : memref<2x8x32xf32, #tpu.memory_space<vmem>>, vector<2x8x32xf32>
    %1 = vector.shape_cast %0 : vector<2x8x32xf32> to vector<16x32xf32>
    %c0_2 = arith.constant 0 : index
    %c0_3 = arith.constant 0 : index
    %2 = vector.load %arg2[%c0_2, %c0_3] : memref<1x32xf32, #tpu.memory_space<vmem>>, vector<1x32xf32>
    %c0_4 = arith.constant 0 : index
    %c0_5 = arith.constant 0 : index
    %3 = vector.load %arg3[%c0_4, %c0_5] : memref<1x32xf32, #tpu.memory_space<vmem>>, vector<1x32xf32>
    %cst = arith.constant dense<0.000000e+00> : vector<16xf32>
    %4 = vector.multi_reduction <add>, %1, %cst [1] : vector<16x32xf32> to vector<16xf32>
    %5 = vector.shape_cast %4 : vector<16xf32> to vector<16x1xf32>
    %cst_6 = arith.constant 3.200000e+01 : f32
    %6 = vector.broadcast %cst_6 : f32 to vector<16x1xf32>
    %7 = arith.divf %5, %6 : vector<16x1xf32>
    %8 = vector.broadcast %7 : vector<16x1xf32> to vector<16x32xf32>
    %9 = arith.subf %1, %8 : vector<16x32xf32>
    %10 = arith.mulf %9, %9 : vector<16x32xf32>
    %cst_7 = arith.constant dense<0.000000e+00> : vector<16xf32>
    %11 = vector.multi_reduction <add>, %10, %cst_7 [1] : vector<16x32xf32> to vector<16xf32>
    %12 = vector.shape_cast %11 : vector<16xf32> to vector<16x1xf32>
    %cst_8 = arith.constant 3.200000e+01 : f32
    %13 = vector.broadcast %cst_8 : f32 to vector<16x1xf32>
    %14 = arith.divf %12, %13 : vector<16x1xf32>
    %15 = vector.broadcast %7 : vector<16x1xf32> to vector<16x32xf32>
    %16 = arith.subf %1, %15 : vector<16x32xf32>
    %cst_9 = arith.constant 9.99999974E-6 : f32
    %17 = vector.broadcast %cst_9 : f32 to vector<16x1xf32>
    %18 = arith.addf %14, %17 : vector<16x1xf32>
    %19 = math.rsqrt %18 : vector<16x1xf32>
    %20 = vector.broadcast %19 : vector<16x1xf32> to vector<16x32xf32>
    %21 = arith.mulf %16, %20 : vector<16x32xf32>
    %22 = vector.broadcast %2 : vector<1x32xf32> to vector<16x32xf32>
    %23 = arith.mulf %21, %22 : vector<16x32xf32>
    %24 = vector.broadcast %3 : vector<1x32xf32> to vector<16x32xf32>
    %25 = arith.addf %23, %24 : vector<16x32xf32>
    %c0_10 = arith.constant 0 : index
    %c0_11 = arith.constant 0 : index
    %26 = vector.load %arg4[%c0_10, %c0_11] : memref<16x8xf32, #tpu.memory_space<vmem>>, vector<16x8xf32>
    %c0_12 = arith.constant 0 : index
    %c0_13 = arith.constant 0 : index
    %27 = vector.load %arg5[%c0_12, %c0_13] : memref<16x1xf32, #tpu.memory_space<vmem>>, vector<16x1xf32>
    %c0_14 = arith.constant 0 : index
    %c0_15 = arith.constant 0 : index
    %28 = vector.load %arg6[%c0_14, %c0_15] : memref<8x16xf32, #tpu.memory_space<vmem>>, vector<8x16xf32>
    %c0_16 = arith.constant 0 : index
    %c0_17 = arith.constant 0 : index
    %29 = vector.load %arg7[%c0_16, %c0_17] : memref<8x1xf32, #tpu.memory_space<vmem>>, vector<8x1xf32>
    %30 = vector.extract_strided_slice %25 {offsets = [0, 0], sizes = [8, 32], strides = [1, 1]} : vector<16x32xf32> to vector<8x32xf32>
    %cst_18 = arith.constant dense<0.000000e+00> : vector<16x32xf32>
    %31 = tpu.matmul %26, %30, %cst_18 {dimension_numbers = #tpu.dot_dimension_numbers<[1], [0], [0], [1], [0, 0, 1, 1], [], []>} : vector<16x8xf32>, vector<8x32xf32>, vector<16x32xf32> -> vector<16x32xf32>
    %32 = vector.broadcast %27 : vector<16x1xf32> to vector<16x32xf32>
    %33 = arith.addf %31, %32 : vector<16x32xf32>
    %cst_19 = arith.constant 5.000000e-01 : f32
    %34 = vector.broadcast %cst_19 : f32 to vector<16x32xf32>
    %35 = arith.mulf %34, %33 : vector<16x32xf32>
    %cst_20 = arith.constant 0.707106769 : f32
    %36 = vector.broadcast %cst_20 : f32 to vector<16x32xf32>
    %37 = arith.mulf %33, %36 : vector<16x32xf32>
    %38 = math.erf %37 : vector<16x32xf32>
    %cst_21 = arith.constant 1.000000e+00 : f32
    %39 = vector.broadcast %cst_21 : f32 to vector<16x32xf32>
    %40 = arith.addf %39, %38 : vector<16x32xf32>
    %41 = arith.mulf %35, %40 : vector<16x32xf32>
    %cst_22 = arith.constant dense<0.000000e+00> : vector<8x32xf32>
    %42 = tpu.matmul %28, %41, %cst_22 {dimension_numbers = #tpu.dot_dimension_numbers<[1], [0], [0], [1], [0, 0, 1, 1], [], []>} : vector<8x16xf32>, vector<16x32xf32>, vector<8x32xf32> -> vector<8x32xf32>
    %43 = vector.broadcast %29 : vector<8x1xf32> to vector<8x32xf32>
    %44 = arith.addf %42, %43 : vector<8x32xf32>
    %45 = vector.extract_strided_slice %25 {offsets = [8, 0], sizes = [8, 32], strides = [1, 1]} : vector<16x32xf32> to vector<8x32xf32>
    %cst_23 = arith.constant dense<0.000000e+00> : vector<16x32xf32>
    %46 = tpu.matmul %26, %45, %cst_23 {dimension_numbers = #tpu.dot_dimension_numbers<[1], [0], [0], [1], [0, 0, 1, 1], [], []>} : vector<16x8xf32>, vector<8x32xf32>, vector<16x32xf32> -> vector<16x32xf32>
    %47 = vector.broadcast %27 : vector<16x1xf32> to vector<16x32xf32>
    %48 = arith.addf %46, %47 : vector<16x32xf32>
    %cst_24 = arith.constant 5.000000e-01 : f32
    %49 = vector.broadcast %cst_24 : f32 to vector<16x32xf32>
    %50 = arith.mulf %49, %48 : vector<16x32xf32>
    %cst_25 = arith.constant 0.707106769 : f32
    %51 = vector.broadcast %cst_25 : f32 to vector<16x32xf32>
    %52 = arith.mulf %48, %51 : vector<16x32xf32>
    %53 = math.erf %52 : vector<16x32xf32>
    %cst_26 = arith.constant 1.000000e+00 : f32
    %54 = vector.broadcast %cst_26 : f32 to vector<16x32xf32>
    %55 = arith.addf %54, %53 : vector<16x32xf32>
    %56 = arith.mulf %50, %55 : vector<16x32xf32>
    %cst_27 = arith.constant dense<0.000000e+00> : vector<8x32xf32>
    %57 = tpu.matmul %28, %56, %cst_27 {dimension_numbers = #tpu.dot_dimension_numbers<[1], [0], [0], [1], [0, 0, 1, 1], [], []>} : vector<8x16xf32>, vector<16x32xf32>, vector<8x32xf32> -> vector<8x32xf32>
    %58 = vector.broadcast %29 : vector<8x1xf32> to vector<8x32xf32>
    %59 = arith.addf %57, %58 : vector<8x32xf32>
    %60 = tpu.concatenate %44, %59 in 0 : vector<8x32xf32>, vector<8x32xf32> -> vector<16x32xf32>
    %61 = arith.addf %1, %60 : vector<16x32xf32>
    %c0_28 = arith.constant 0 : index
    %c0_29 = arith.constant 0 : index
    %62 = vector.load %arg8[%c0_28, %c0_29] : memref<1x32xf32, #tpu.memory_space<vmem>>, vector<1x32xf32>
    %c0_30 = arith.constant 0 : index
    %c0_31 = arith.constant 0 : index
    %63 = vector.load %arg9[%c0_30, %c0_31] : memref<1x32xf32, #tpu.memory_space<vmem>>, vector<1x32xf32>
    %cst_32 = arith.constant dense<0.000000e+00> : vector<16xf32>
    %64 = vector.multi_reduction <add>, %61, %cst_32 [1] : vector<16x32xf32> to vector<16xf32>
    %65 = vector.shape_cast %64 : vector<16xf32> to vector<16x1xf32>
    %cst_33 = arith.constant 3.200000e+01 : f32
    %66 = vector.broadcast %cst_33 : f32 to vector<16x1xf32>
    %67 = arith.divf %65, %66 : vector<16x1xf32>
    %68 = vector.broadcast %67 : vector<16x1xf32> to vector<16x32xf32>
    %69 = arith.subf %61, %68 : vector<16x32xf32>
    %70 = arith.mulf %69, %69 : vector<16x32xf32>
    %cst_34 = arith.constant dense<0.000000e+00> : vector<16xf32>
    %71 = vector.multi_reduction <add>, %70, %cst_34 [1] : vector<16x32xf32> to vector<16xf32>
    %72 = vector.shape_cast %71 : vector<16xf32> to vector<16x1xf32>
    %cst_35 = arith.constant 3.200000e+01 : f32
    %73 = vector.broadcast %cst_35 : f32 to vector<16x1xf32>
    %74 = arith.divf %72, %73 : vector<16x1xf32>
    %75 = vector.broadcast %67 : vector<16x1xf32> to vector<16x32xf32>
    %76 = arith.subf %61, %75 : vector<16x32xf32>
    %cst_36 = arith.constant 9.99999974E-6 : f32
    %77 = vector.broadcast %cst_36 : f32 to vector<16x1xf32>
    %78 = arith.addf %74, %77 : vector<16x1xf32>
    %79 = math.rsqrt %78 : vector<16x1xf32>
    %80 = vector.broadcast %79 : vector<16x1xf32> to vector<16x32xf32>
    %81 = arith.mulf %76, %80 : vector<16x32xf32>
    %82 = vector.broadcast %62 : vector<1x32xf32> to vector<16x32xf32>
    %83 = arith.mulf %81, %82 : vector<16x32xf32>
    %84 = vector.broadcast %63 : vector<1x32xf32> to vector<16x32xf32>
    %85 = arith.addf %83, %84 : vector<16x32xf32>
    %c0_37 = arith.constant 0 : index
    %c0_38 = arith.constant 0 : index
    %86 = vector.load %arg10[%c0_37, %c0_38] : memref<32x64xf32, #tpu.memory_space<vmem>>, vector<32x64xf32>
    %cst_39 = arith.constant dense<0.000000e+00> : vector<16x64xf32>
    %87 = tpu.matmul %85, %86, %cst_39 {dimension_numbers = #tpu.dot_dimension_numbers<[1], [0], [0], [1], [0, 0, 1, 1], [], []>} : vector<16x32xf32>, vector<32x64xf32>, vector<16x64xf32> -> vector<16x64xf32>
    %c0_40 = arith.constant 0 : index
    %c0_41 = arith.constant 0 : index
    %88 = vector.load %arg11[%c0_40, %c0_41] : memref<1x64xf32, #tpu.memory_space<vmem>>, vector<1x64xf32>
    %89 = vector.broadcast %88 : vector<1x64xf32> to vector<16x64xf32>
    %90 = arith.addf %87, %89 : vector<16x64xf32>
    %cst_42 = arith.constant 5.000000e-01 : f32
    %91 = vector.broadcast %cst_42 : f32 to vector<16x64xf32>
    %92 = arith.mulf %91, %90 : vector<16x64xf32>
    %cst_43 = arith.constant 0.707106769 : f32
    %93 = vector.broadcast %cst_43 : f32 to vector<16x64xf32>
    %94 = arith.mulf %90, %93 : vector<16x64xf32>
    %95 = math.erf %94 : vector<16x64xf32>
    %cst_44 = arith.constant 1.000000e+00 : f32
    %96 = vector.broadcast %cst_44 : f32 to vector<16x64xf32>
    %97 = arith.addf %96, %95 : vector<16x64xf32>
    %98 = arith.mulf %92, %97 : vector<16x64xf32>
    %c0_45 = arith.constant 0 : index
    %c0_46 = arith.constant 0 : index
    %99 = vector.load %arg12[%c0_45, %c0_46] : memref<64x32xf32, #tpu.memory_space<vmem>>, vector<64x32xf32>
    %cst_47 = arith.constant dense<0.000000e+00> : vector<16x32xf32>
    %100 = tpu.matmul %98, %99, %cst_47 {dimension_numbers = #tpu.dot_dimension_numbers<[1], [0], [0], [1], [0, 0, 1, 1], [], []>} : vector<16x64xf32>, vector<64x32xf32>, vector<16x32xf32> -> vector<16x32xf32>
    %c0_48 = arith.constant 0 : index
    %c0_49 = arith.constant 0 : index
    %101 = vector.load %arg13[%c0_48, %c0_49] : memref<1x32xf32, #tpu.memory_space<vmem>>, vector<1x32xf32>
    %102 = vector.broadcast %101 : vector<1x32xf32> to vector<16x32xf32>
    %103 = arith.addf %100, %102 : vector<16x32xf32>
    %104 = arith.addf %61, %103 : vector<16x32xf32>
    %105 = vector.shape_cast %104 : vector<16x32xf32> to vector<2x8x32xf32>
    %c0_50 = arith.constant 0 : index
    %c0_51 = arith.constant 0 : index
    %c0_52 = arith.constant 0 : index
    %106 = vector.load %arg14[%c0_50, %c0_51, %c0_52] : memref<2x8x32xf32, #tpu.memory_space<vmem>>, vector<2x8x32xf32>
    tpu.vector_store %arg14[%c0_50, %c0_51, %c0_52], %105 {strides = array<i32>} : memref<2x8x32xf32, #tpu.memory_space<vmem>>, vector<2x8x32xf32>,
    return
  }
  func.func @transform_0(%arg0: i32) -> (i32, i32, i32) {
    %c0_i32 = arith.constant 0 : i32
    %c0_i32_0 = arith.constant 0 : i32
    %c0_i32_1 = arith.constant 0 : i32
    return %arg0, %c0_i32, %c0_i32_0 : i32, i32, i32
  }
  func.func @transform_1(%arg0: i32) -> (i32, i32) {
    %c0_i32 = arith.constant 0 : i32
    %c0_i32_0 = arith.constant 0 : i32
    %c0_i32_1 = arith.constant 0 : i32
    return %c0_i32, %c0_i32_0 : i32, i32
  }
  func.func @transform_2(%arg0: i32) -> (i32, i32) {
    %c0_i32 = arith.constant 0 : i32
    %c0_i32_0 = arith.constant 0 : i32
    %c0_i32_1 = arith.constant 0 : i32
    return %c0_i32, %c0_i32_0 : i32, i32
  }
  func.func @transform_3(%arg0: i32) -> (i32, i32) {
    %c0_i32 = arith.constant 0 : i32
    %c0_i32_0 = arith.constant 0 : i32
    %c0_i32_1 = arith.constant 0 : i32
    return %c0_i32, %c0_i32_0 : i32, i32
  }
  func.func @transform_4(%arg0: i32) -> (i32, i32) {
    %c0_i32 = arith.constant 0 : i32
    %c0_i32_0 = arith.constant 0 : i32
    %c0_i32_1 = arith.constant 0 : i32
    return %c0_i32, %c0_i32_0 : i32, i32
  }
  func.func @transform_5(%arg0: i32) -> (i32, i32) {
    %c0_i32 = arith.constant 0 : i32
    %c0_i32_0 = arith.constant 0 : i32
    %c0_i32_1 = arith.constant 0 : i32
    return %c0_i32, %c0_i32_0 : i32, i32
  }
  func.func @transform_6(%arg0: i32) -> (i32, i32) {
    %c0_i32 = arith.constant 0 : i32
    %c0_i32_0 = arith.constant 0 : i32
    %c0_i32_1 = arith.constant 0 : i32
    return %c0_i32, %c0_i32_0 : i32, i32
  }
  func.func @transform_7(%arg0: i32) -> (i32, i32) {
    %c0_i32 = arith.constant 0 : i32
    %c0_i32_0 = arith.constant 0 : i32
    %c0_i32_1 = arith.constant 0 : i32
    return %c0_i32, %c0_i32_0 : i32, i32
  }
  func.func @transform_8(%arg0: i32) -> (i32, i32) {
    %c0_i32 = arith.constant 0 : i32
    %c0_i32_0 = arith.constant 0 : i32
    %c0_i32_1 = arith.constant 0 : i32
    return %c0_i32, %c0_i32_0 : i32, i32
  }
  func.func @transform_9(%arg0: i32) -> (i32, i32) {
    %c0_i32 = arith.constant 0 : i32
    %c0_i32_0 = arith.constant 0 : i32
    %c0_i32_1 = arith.constant 0 : i32
    return %c0_i32, %c0_i32_0 : i32, i32
  }
  func.func @transform_10(%arg0: i32) -> (i32, i32) {
    %c0_i32 = arith.constant 0 : i32
    %c0_i32_0 = arith.constant 0 : i32
    %c0_i32_1 = arith.constant 0 : i32
    return %c0_i32, %c0_i32_0 : i32, i32
  }
  func.func @transform_11(%arg0: i32) -> (i32, i32) {
    %c0_i32 = arith.constant 0 : i32
    %c0_i32_0 = arith.constant 0 : i32
    %c0_i32_1 = arith.constant 0 : i32
    return %c0_i32, %c0_i32_0 : i32, i32
  }
  func.func @transform_12(%arg0: i32) -> (i32, i32) {
    %c0_i32 = arith.constant 0 : i32
    %c0_i32_0 = arith.constant 0 : i32
    %c0_i32_1 = arith.constant 0 : i32
    return %c0_i32, %c0_i32_0 : i32, i32
  }
  func.func @transform_13(%arg0: i32) -> (i32, i32, i32) {
    %c0_i32 = arith.constant 0 : i32
    %c0_i32_0 = arith.constant 0 : i32
    %c0_i32_1 = arith.constant 0 : i32
    return %arg0, %c0_i32, %c0_i32_0 : i32, i32, i32
  }
}

module attributes {stable_mosaic.version = 11 : i64} {
  func.func @_mixer_kernel(%arg0: i32, %arg1: memref<2x8x32xf32, #tpu.memory_space<vmem>>, %arg2: memref<1x32xf32, #tpu.memory_space<vmem>>, %arg3: memref<1x32xf32, #tpu.memory_space<vmem>>, %arg4: memref<16x8xf32, #tpu.memory_space<vmem>>, %arg5: memref<16x1xf32, #tpu.memory_space<vmem>>, %arg6: memref<8x16xf32, #tpu.memory_space<vmem>>, %arg7: memref<8x1xf32, #tpu.memory_space<vmem>>, %arg8: memref<1x32xf32, #tpu.memory_space<vmem>>, %arg9: memref<1x32xf32, #tpu.memory_space<vmem>>, %arg10: memref<32x64xf32, #tpu.memory_space<vmem>>, %arg11: memref<1x64xf32, #tpu.memory_space<vmem>>, %arg12: memref<64x32xf32, #tpu.memory_space<vmem>>, %arg13: memref<1x32xf32, #tpu.memory_space<vmem>>, %arg14: memref<2x8x32xf32, #tpu.memory_space<vmem>>) attributes {dimension_semantics = [#tpu.dimension_semantics<parallel>], iteration_bounds = array<i64: 1>, scalar_prefetch = 0 : i64, scratch_operands = 0 : i64, tpu.core_type = #tpu.core_type<tc>, window_params = [{transform_indices = @transform_0, window_bounds = array<i64: 2, 8, 32>}, {pipeline_mode = #tpu.pipeline_mode<synchronous>, transform_indices = @transform_1, window_bounds = array<i64: 1, 32>}, {pipeline_mode = #tpu.pipeline_mode<synchronous>, transform_indices = @transform_2, window_bounds = array<i64: 1, 32>}, {pipeline_mode = #tpu.pipeline_mode<synchronous>, transform_indices = @transform_3, window_bounds = array<i64: 16, 8>}, {pipeline_mode = #tpu.pipeline_mode<synchronous>, transform_indices = @transform_4, window_bounds = array<i64: 16, 1>}, {pipeline_mode = #tpu.pipeline_mode<synchronous>, transform_indices = @transform_5, window_bounds = array<i64: 8, 16>}, {pipeline_mode = #tpu.pipeline_mode<synchronous>, transform_indices = @transform_6, window_bounds = array<i64: 8, 1>}, {pipeline_mode = #tpu.pipeline_mode<synchronous>, transform_indices = @transform_7, window_bounds = array<i64: 1, 32>}, {pipeline_mode = #tpu.pipeline_mode<synchronous>, transform_indices = @transform_8, window_bounds = array<i64: 1, 32>}, {pipeline_mode = #tpu.pipeline_mode<synchronous>, transform_indices = @transform_9, window_bounds = array<i64: 32, 64>}, {pipeline_mode = #tpu.pipeline_mode<synchronous>, transform_indices = @transform_10, window_bounds = array<i64: 1, 64>}, {pipeline_mode = #tpu.pipeline_mode<synchronous>, transform_indices = @transform_11, window_bounds = array<i64: 64, 32>}, {pipeline_mode = #tpu.pipeline_mode<synchronous>, transform_indices = @transform_12, window_bounds = array<i64: 1, 32>}, {transform_indices = @transform_13, window_bounds = array<i64: 2, 8, 32>}]} {
    %c0 = arith.constant 0 : index
    %c0_0 = arith.constant 0 : index
    %c0_1 = arith.constant 0 : index
    %0 = vector.load %arg1[%c0, %c0_0, %c0_1] : memref<2x8x32xf32, #tpu.memory_space<vmem>>, vector<2x8x32xf32>
    %1 = vector.shape_cast %0 : vector<2x8x32xf32> to vector<16x32xf32>
    %c0_2 = arith.constant 0 : index
    %c0_3 = arith.constant 0 : index
    %2 = vector.load %arg2[%c0_2, %c0_3] : memref<1x32xf32, #tpu.memory_space<vmem>>, vector<1x32xf32>
    %c0_4 = arith.constant 0 : index
    %c0_5 = arith.constant 0 : index
    %3 = vector.load %arg3[%c0_4, %c0_5] : memref<1x32xf32, #tpu.memory_space<vmem>>, vector<1x32xf32>
    %cst = arith.constant dense<0.000000e+00> : vector<16xf32>
    %4 = vector.multi_reduction <add>, %1, %cst [1] : vector<16x32xf32> to vector<16xf32>
    %5 = vector.shape_cast %4 : vector<16xf32> to vector<16x1xf32>
    %cst_6 = arith.constant 3.200000e+01 : f32
    %6 = vector.broadcast %cst_6 : f32 to vector<16x1xf32>
    %7 = arith.divf %5, %6 : vector<16x1xf32>
    %8 = vector.broadcast %7 : vector<16x1xf32> to vector<16x32xf32>
    %9 = arith.subf %1, %8 : vector<16x32xf32>
    %10 = arith.mulf %9, %9 : vector<16x32xf32>
    %cst_7 = arith.constant dense<0.000000e+00> : vector<16xf32>
    %11 = vector.multi_reduction <add>, %10, %cst_7 [1] : vector<16x32xf32> to vector<16xf32>
    %12 = vector.shape_cast %11 : vector<16xf32> to vector<16x1xf32>
    %cst_8 = arith.constant 3.200000e+01 : f32
    %13 = vector.broadcast %cst_8 : f32 to vector<16x1xf32>
    %14 = arith.divf %12, %13 : vector<16x1xf32>
    %15 = vector.broadcast %7 : vector<16x1xf32> to vector<16x32xf32>
    %16 = arith.subf %1, %15 : vector<16x32xf32>
    %cst_9 = arith.constant 9.99999974E-6 : f32
    %17 = vector.broadcast %cst_9 : f32 to vector<16x1xf32>
    %18 = arith.addf %14, %17 : vector<16x1xf32>
    %19 = math.rsqrt %18 : vector<16x1xf32>
    %20 = vector.broadcast %19 : vector<16x1xf32> to vector<16x32xf32>
    %21 = arith.mulf %16, %20 : vector<16x32xf32>
    %22 = vector.broadcast %2 : vector<1x32xf32> to vector<16x32xf32>
    %23 = arith.mulf %21, %22 : vector<16x32xf32>
    %24 = vector.broadcast %3 : vector<1x32xf32> to vector<16x32xf32>
    %25 = arith.addf %23, %24 : vector<16x32xf32>
    %c0_10 = arith.constant 0 : index
    %c0_11 = arith.constant 0 : index
    %26 = vector.load %arg4[%c0_10, %c0_11] : memref<16x8xf32, #tpu.memory_space<vmem>>, vector<16x8xf32>
    %c0_12 = arith.constant 0 : index
    %c0_13 = arith.constant 0 : index
    %27 = vector.load %arg5[%c0_12, %c0_13] : memref<16x1xf32, #tpu.memory_space<vmem>>, vector<16x1xf32>
    %c0_14 = arith.constant 0 : index
    %c0_15 = arith.constant 0 : index
    %28 = vector.load %arg6[%c0_14, %c0_15] : memref<8x16xf32, #tpu.memory_space<vmem>>, vector<8x16xf32>
    %c0_16 = arith.constant 0 : index
    %c0_17 = arith.constant 0 : index
    %29 = vector.load %arg7[%c0_16, %c0_17] : memref<8x1xf32, #tpu.memory_space<vmem>>, vector<8x1xf32>
    %30 = vector.extract_strided_slice %25 {offsets = [0, 0], sizes = [8, 32], strides = [1, 1]} : vector<16x32xf32> to vector<8x32xf32>
    %cst_18 = arith.constant dense<0.000000e+00> : vector<16x32xf32>
    %31 = tpu.matmul %26, %30, %cst_18 {dimension_numbers = #tpu.dot_dimension_numbers<[1], [0], [0], [1], [0, 0, 1, 1], [], []>} : vector<16x8xf32>, vector<8x32xf32>, vector<16x32xf32> -> vector<16x32xf32>
    %32 = vector.broadcast %27 : vector<16x1xf32> to vector<16x32xf32>
    %33 = arith.addf %31, %32 : vector<16x32xf32>
    %cst_19 = arith.constant 5.000000e-01 : f32
    %34 = vector.broadcast %cst_19 : f32 to vector<16x32xf32>
    %35 = arith.mulf %34, %33 : vector<16x32xf32>
    %cst_20 = arith.constant 0.707106769 : f32
    %36 = vector.broadcast %cst_20 : f32 to vector<16x32xf32>
    %37 = arith.mulf %33, %36 : vector<16x32xf32>
    %38 = math.erf %37 : vector<16x32xf32>
    %cst_21 = arith.constant 1.000000e+00 : f32
    %39 = vector.broadcast %cst_21 : f32 to vector<16x32xf32>
    %40 = arith.addf %39, %38 : vector<16x32xf32>
    %41 = arith.mulf %35, %40 : vector<16x32xf32>
    %cst_22 = arith.constant dense<0.000000e+00> : vector<8x32xf32>
    %42 = tpu.matmul %28, %41, %cst_22 {dimension_numbers = #tpu.dot_dimension_numbers<[1], [0], [0], [1], [0, 0, 1, 1], [], []>} : vector<8x16xf32>, vector<16x32xf32>, vector<8x32xf32> -> vector<8x32xf32>
    %43 = vector.broadcast %29 : vector<8x1xf32> to vector<8x32xf32>
    %44 = arith.addf %42, %43 : vector<8x32xf32>
    %45 = vector.extract_strided_slice %25 {offsets = [8, 0], sizes = [8, 32], strides = [1, 1]} : vector<16x32xf32> to vector<8x32xf32>
    %cst_23 = arith.constant dense<0.000000e+00> : vector<16x32xf32>
    %46 = tpu.matmul %26, %45, %cst_23 {dimension_numbers = #tpu.dot_dimension_numbers<[1], [0], [0], [1], [0, 0, 1, 1], [], []>} : vector<16x8xf32>, vector<8x32xf32>, vector<16x32xf32> -> vector<16x32xf32>
    %47 = vector.broadcast %27 : vector<16x1xf32> to vector<16x32xf32>
    %48 = arith.addf %46, %47 : vector<16x32xf32>
    %cst_24 = arith.constant 5.000000e-01 : f32
    %49 = vector.broadcast %cst_24 : f32 to vector<16x32xf32>
    %50 = arith.mulf %49, %48 : vector<16x32xf32>
    %cst_25 = arith.constant 0.707106769 : f32
    %51 = vector.broadcast %cst_25 : f32 to vector<16x32xf32>
    %52 = arith.mulf %48, %51 : vector<16x32xf32>
    %53 = math.erf %52 : vector<16x32xf32>
    %cst_26 = arith.constant 1.000000e+00 : f32
    %54 = vector.broadcast %cst_26 : f32 to vector<16x32xf32>
    %55 = arith.addf %54, %53 : vector<16x32xf32>
    %56 = arith.mulf %50, %55 : vector<16x32xf32>
    %cst_27 = arith.constant dense<0.000000e+00> : vector<8x32xf32>
    %57 = tpu.matmul %28, %56, %cst_27 {dimension_numbers = #tpu.dot_dimension_numbers<[1], [0], [0], [1], [0, 0, 1, 1], [], []>} : vector<8x16xf32>, vector<16x32xf32>, vector<8x32xf32> -> vector<8x32xf32>
    %58 = vector.broadcast %29 : vector<8x1xf32> to vector<8x32xf32>
    %59 = arith.addf %57, %58 : vector<8x32xf32>
    %60 = tpu.concatenate %44, %59 in 0 : vector<8x32xf32>, vector<8x32xf32> -> vector<16x32xf32>
    %61 = arith.addf %1, %60 : vector<16x32xf32>
    %c0_28 = arith.constant 0 : index
    %c0_29 = arith.constant 0 : index
    %62 = vector.load %arg8[%c0_28, %c0_29] : memref<1x32xf32, #tpu.memory_space<vmem>>, vector<1x32xf32>
    %c0_30 = arith.constant 0 : index
    %c0_31 = arith.constant 0 : index
    %63 = vector.load %arg9[%c0_30, %c0_31] : memref<1x32xf32, #tpu.memory_space<vmem>>, vector<1x32xf32>
    %cst_32 = arith.constant dense<0.000000e+00> : vector<16xf32>
    %64 = vector.multi_reduction <add>, %61, %cst_32 [1] : vector<16x32xf32> to vector<16xf32>
    %65 = vector.shape_cast %64 : vector<16xf32> to vector<16x1xf32>
    %cst_33 = arith.constant 3.200000e+01 : f32
    %66 = vector.broadcast %cst_33 : f32 to vector<16x1xf32>
    %67 = arith.divf %65, %66 : vector<16x1xf32>
    %68 = vector.broadcast %67 : vector<16x1xf32> to vector<16x32xf32>
    %69 = arith.subf %61, %68 : vector<16x32xf32>
    %70 = arith.mulf %69, %69 : vector<16x32xf32>
    %cst_34 = arith.constant dense<0.000000e+00> : vector<16xf32>
    %71 = vector.multi_reduction <add>, %70, %cst_34 [1] : vector<16x32xf32> to vector<16xf32>
    %72 = vector.shape_cast %71 : vector<16xf32> to vector<16x1xf32>
    %cst_35 = arith.constant 3.200000e+01 : f32
    %73 = vector.broadcast %cst_35 : f32 to vector<16x1xf32>
    %74 = arith.divf %72, %73 : vector<16x1xf32>
    %75 = vector.broadcast %67 : vector<16x1xf32> to vector<16x32xf32>
    %76 = arith.subf %61, %75 : vector<16x32xf32>
    %cst_36 = arith.constant 9.99999974E-6 : f32
    %77 = vector.broadcast %cst_36 : f32 to vector<16x1xf32>
    %78 = arith.addf %74, %77 : vector<16x1xf32>
    %79 = math.rsqrt %78 : vector<16x1xf32>
    %80 = vector.broadcast %79 : vector<16x1xf32> to vector<16x32xf32>
    %81 = arith.mulf %76, %80 : vector<16x32xf32>
    %82 = vector.broadcast %62 : vector<1x32xf32> to vector<16x32xf32>
    %83 = arith.mulf %81, %82 : vector<16x32xf32>
    %84 = vector.broadcast %63 : vector<1x32xf32> to vector<16x32xf32>
    %85 = arith.addf %83, %84 : vector<16x32xf32>
    %c0_37 = arith.constant 0 : index
    %c0_38 = arith.constant 0 : index
    %86 = vector.load %arg10[%c0_37, %c0_38] : memref<32x64xf32, #tpu.memory_space<vmem>>, vector<32x64xf32>
    %cst_39 = arith.constant dense<0.000000e+00> : vector<16x64xf32>
    %87 = tpu.matmul %85, %86, %cst_39 {dimension_numbers = #tpu.dot_dimension_numbers<[1], [0], [0], [1], [0, 0, 1, 1], [], []>} : vector<16x32xf32>, vector<32x64xf32>, vector<16x64xf32> -> vector<16x64xf32>
    %c0_40 = arith.constant 0 : index
    %c0_41 = arith.constant 0 : index
    %88 = vector.load %arg11[%c0_40, %c0_41] : memref<1x64xf32, #tpu.memory_space<vmem>>, vector<1x64xf32>
    %89 = vector.broadcast %88 : vector<1x64xf32> to vector<16x64xf32>
    %90 = arith.addf %87, %89 : vector<16x64xf32>
    %cst_42 = arith.constant 5.000000e-01 : f32
    %91 = vector.broadcast %cst_42 : f32 to vector<16x64xf32>
    %92 = arith.mulf %91, %90 : vector<16x64xf32>
    %cst_43 = arith.constant 0.707106769 : f32
    %93 = vector.broadcast %cst_43 : f32 to vector<16x64xf32>
    %94 = arith.mulf %90, %93 : vector<16x64xf32>
    %95 = math.erf %94 : vector<16x64xf32>
    %cst_44 = arith.constant 1.000000e+00 : f32
    %96 = vector.broadcast %cst_44 : f32 to vector<16x64xf32>
    %97 = arith.addf %96, %95 : vector<16x64xf32>
    %98 = arith.mulf %92, %97 : vector<16x64xf32>
    %c0_45 = arith.constant 0 : index
    %c0_46 = arith.constant 0 : index
    %99 = vector.load %arg12[%c0_45, %c0_46] : memref<64x32xf32, #tpu.memory_space<vmem>>, vector<64x32xf32>
    %cst_47 = arith.constant dense<0.000000e+00> : vector<16x32xf32>
    %100 = tpu.matmul %98, %99, %cst_47 {dimension_numbers = #tpu.dot_dimension_numbers<[1], [0], [0], [1], [0, 0, 1, 1], [], []>} : vector<16x64xf32>, vector<64x32xf32>, vector<16x32xf32> -> vector<16x32xf32>
    %c0_48 = arith.constant 0 : index
    %c0_49 = arith.constant 0 : index
    %101 = vector.load %arg13[%c0_48, %c0_49] : memref<1x32xf32, #tpu.memory_space<vmem>>, vector<1x32xf32>
    %102 = vector.broadcast %101 : vector<1x32xf32> to vector<16x32xf32>
    %103 = arith.addf %100, %102 : vector<16x32xf32>
    %104 = arith.addf %61, %103 : vector<16x32xf32>
    %105 = vector.shape_cast %104 : vector<16x32xf32> to vector<2x8x32xf32>
    %c0_50 = arith.constant 0 : index
    %c0_51 = arith.constant 0 : index
    %c0_52 = arith.constant 0 : index
    %106 = vector.load %arg14[%c0_50, %c0_51, %c0_52] : memref<2x8x32xf32, #tpu.memory_space<vmem>>, vector<2x8x32xf32>
    tpu.vector_store %arg14[%c0_50, %c0_51, %c0_52], %105 {strides = array<i32>} : memref<2x8x32xf32, #tpu.memory_space<vmem>>, vector<2x8x32xf32>,
    return
  }
  func.func @transform_0(%arg0: i32) -> (i32, i32, i32) {
    %c0_i32 = arith.constant 0 : i32
    %c0_i32_0 = arith.constant 0 : i32
    %c0_i32_1 = arith.constant 0 : i32
    return %arg0, %c0_i32, %c0_i32_0 : i32, i32, i32
  }
  func.func @transform_1(%arg0: i32) -> (i32, i32) {
    %c0_i32 = arith.constant 0 : i32
    %c0_i32_0 = arith.constant 0 : i32
    %c0_i32_1 = arith.constant 0 : i32
    return %c0_i32, %c0_i32_0 : i32, i32
  }
  func.func @transform_2(%arg0: i32) -> (i32, i32) {
    %c0_i32 = arith.constant 0 : i32
    %c0_i32_0 = arith.constant 0 : i32
    %c0_i32_1 = arith.constant 0 : i32
    return %c0_i32, %c0_i32_0 : i32, i32
  }
  func.func @transform_3(%arg0: i32) -> (i32, i32) {
    %c0_i32 = arith.constant 0 : i32
    %c0_i32_0 = arith.constant 0 : i32
    %c0_i32_1 = arith.constant 0 : i32
    return %c0_i32, %c0_i32_0 : i32, i32
  }
  func.func @transform_4(%arg0: i32) -> (i32, i32) {
    %c0_i32 = arith.constant 0 : i32
    %c0_i32_0 = arith.constant 0 : i32
    %c0_i32_1 = arith.constant 0 : i32
    return %c0_i32, %c0_i32_0 : i32, i32
  }
  func.func @transform_5(%arg0: i32) -> (i32, i32) {
    %c0_i32 = arith.constant 0 : i32
    %c0_i32_0 = arith.constant 0 : i32
    %c0_i32_1 = arith.constant 0 : i32
    return %c0_i32, %c0_i32_0 : i32, i32
  }
  func.func @transform_6(%arg0: i32) -> (i32, i32) {
    %c0_i32 = arith.constant 0 : i32
    %c0_i32_0 = arith.constant 0 : i32
    %c0_i32_1 = arith.constant 0 : i32
    return %c0_i32, %c0_i32_0 : i32, i32
  }
  func.func @transform_7(%arg0: i32) -> (i32, i32) {
    %c0_i32 = arith.constant 0 : i32
    %c0_i32_0 = arith.constant 0 : i32
    %c0_i32_1 = arith.constant 0 : i32
    return %c0_i32, %c0_i32_0 : i32, i32
  }
  func.func @transform_8(%arg0: i32) -> (i32, i32) {
    %c0_i32 = arith.constant 0 : i32
    %c0_i32_0 = arith.constant 0 : i32
    %c0_i32_1 = arith.constant 0 : i32
    return %c0_i32, %c0_i32_0 : i32, i32
  }
  func.func @transform_9(%arg0: i32) -> (i32, i32) {
    %c0_i32 = arith.constant 0 : i32
    %c0_i32_0 = arith.constant 0 : i32
    %c0_i32_1 = arith.constant 0 : i32
    return %c0_i32, %c0_i32_0 : i32, i32
  }
  func.func @transform_10(%arg0: i32) -> (i32, i32) {
    %c0_i32 = arith.constant 0 : i32
    %c0_i32_0 = arith.constant 0 : i32
    %c0_i32_1 = arith.constant 0 : i32
    return %c0_i32, %c0_i32_0 : i32, i32
  }
  func.func @transform_11(%arg0: i32) -> (i32, i32) {
    %c0_i32 = arith.constant 0 : i32
    %c0_i32_0 = arith.constant 0 : i32
    %c0_i32_1 = arith.constant 0 : i32
    return %c0_i32, %c0_i32_0 : i32, i32
  }
  func.func @transform_12(%arg0: i32) -> (i32, i32) {
    %c0_i32 = arith.constant 0 : i32
    %c0_i32_0 = arith.constant 0 : i32
    %c0_i32_1 = arith.constant 0 : i32
    return %c0_i32, %c0_i32_0 : i32, i32
  }
  func.func @transform_13(%arg0: i32) -> (i32, i32, i32) {
    %c0_i32 = arith.constant 0 : i32
    %c0_i32_0 = arith.constant 0 : i32
    %c0_i32_1 = arith.constant 0 : i32
    return %arg0, %c0_i32, %c0_i32_0 : i32, i32, i32
  }
}

</mosaic_0001>

<llo_original>
// kernel: tpu_custom_call.1
$region0: #{tpu_custom_call.1}
  #allocation0 [shape = 'u32[]', space=smem, size = 0x4, offset = 0x4, fixed_abs, tag = 'smem constant byte address 0x4 - core index']
  #allocation1 [shape = 'u32[72,128]{1,0:T(1,128)}', space=vmem, size = 0x9000, scoped, tag = 'internal scratch']
  %s0 = inlined_call_operand.vmem [shape: f32[2,8,32], index: 0, kind: input, shape index: {}]
  %s1 = inlined_call_operand.vmem [shape: f32[1,32], index: 1, kind: input, shape index: {}]
  %s2 = inlined_call_operand.vmem [shape: f32[1,32], index: 2, kind: input, shape index: {}]
  %s3 = inlined_call_operand.vmem [shape: f32[16,8], index: 3, kind: input, shape index: {}]
  %s4 = inlined_call_operand.vmem [shape: f32[16,1], index: 4, kind: input, shape index: {}]
  %s5 = inlined_call_operand.vmem [shape: f32[8,16], index: 5, kind: input, shape index: {}]
  %s6 = inlined_call_operand.vmem [shape: f32[8,1], index: 6, kind: input, shape index: {}]
  %s7 = inlined_call_operand.vmem [shape: f32[1,32], index: 7, kind: input, shape index: {}]
  %s8 = inlined_call_operand.vmem [shape: f32[1,32], index: 8, kind: input, shape index: {}]
  %s9 = inlined_call_operand.vmem [shape: f32[32,64], index: 9, kind: input, shape index: {}]
  %s10 = inlined_call_operand.vmem [shape: f32[1,64], index: 10, kind: input, shape index: {}]
  %s11 = inlined_call_operand.vmem [shape: f32[64,32], index: 11, kind: input, shape index: {}]
  %s12 = inlined_call_operand.vmem [shape: f32[1,32], index: 12, kind: input, shape index: {}]
  %s13 = inlined_call_operand.hbm [shape: f32[2,8,32], index: 13, kind: output, shape index: {}]
  %s14 = sld [smem:[#allocation0]]
  $region62: #{tpu_custom_call.1} parent=0
    _
  %s16 = ssub.s32 1, %s14
  %s17 = scalar_select 0, %s16, %s14
  $region1: #{tpu_custom_call.1} parent=0
    #allocation2 [shape = 'u8[8192]{0}', space=vmem, size = 0x2000, scoped, tag = 'output window, operand 0, single buffered']
    #allocation3 [shape = 's32[1]{0}', space=sflag, size = 0x4, scoped, tag = 'scoped memory for tpu_custom_call.1']
    %18 = vsyncpa [#allocation3], 0
    // Predicated region
    $region2: #{tpu_custom_call.1} parent=1 // pred_check
      _
    $region3: #{tpu_custom_call.1} parent=1 // pred_check_branch
      %20 = sbr.rel (0) target = $region5
    $region4: #{tpu_custom_call.1} parent=1 // pred_region
      _
    $region5: #{tpu_custom_call.1} parent=1 // pred_fallthru
      _
    // Predicated region
    $region6: #{tpu_custom_call.1} parent=1 // pred_check
      _
    $region7: #{tpu_custom_call.1} parent=1 // pred_check_branch
      %22 = sbr.rel (0) target = $region9
    $region8: #{tpu_custom_call.1} parent=1 // pred_region
      _
    $region9: #{tpu_custom_call.1} parent=1 // pred_fallthru
      _
    // Predicated region
    $region10: #{tpu_custom_call.1} parent=1 // pred_check
      _
    $region11: #{tpu_custom_call.1} parent=1 // pred_check_branch
      %24 = sbr.rel (0) target = $region13
    $region12: #{tpu_custom_call.1} parent=1 // pred_region
      _
    $region13: #{tpu_custom_call.1} parent=1 // pred_fallthru
      _
    // Predicated region
    $region14: #{tpu_custom_call.1} parent=1 // pred_check
      _
    $region15: #{tpu_custom_call.1} parent=1 // pred_check_branch
      %26 = sbr.rel (0) target = $region17
    $region16: #{tpu_custom_call.1} parent=1 // pred_region
      _
    $region17: #{tpu_custom_call.1} parent=1 // pred_fallthru
      _
    // Predicated region
    $region18: #{tpu_custom_call.1} parent=1 // pred_check
      _
    $region19: #{tpu_custom_call.1} parent=1 // pred_check_branch
      %28 = sbr.rel (0) target = $region21
    $region20: #{tpu_custom_call.1} parent=1 // pred_region
      _
    $region21: #{tpu_custom_call.1} parent=1 // pred_fallthru
      _
    // Predicated region
    $region22: #{tpu_custom_call.1} parent=1 // pred_check
      _
    $region23: #{tpu_custom_call.1} parent=1 // pred_check_branch
      %30 = sbr.rel (0) target = $region25
    $region24: #{tpu_custom_call.1} parent=1 // pred_region
      _
    $region25: #{tpu_custom_call.1} parent=1 // pred_fallthru
      _
    // Predicated region
    $region26: #{tpu_custom_call.1} parent=1 // pred_check
      _
    $region27: #{tpu_custom_call.1} parent=1 // pred_check_branch
      %32 = sbr.rel (0) target = $region29
    $region28: #{tpu_custom_call.1} parent=1 // pred_region
      _
    $region29: #{tpu_custom_call.1} parent=1 // pred_fallthru
      _
    // Predicated region
    $region30: #{tpu_custom_call.1} parent=1 // pred_check
      _
    $region31: #{tpu_custom_call.1} parent=1 // pred_check_branch
      %34 = sbr.rel (0) target = $region33
    $region32: #{tpu_custom_call.1} parent=1 // pred_region
      _
    $region33: #{tpu_custom_call.1} parent=1 // pred_fallthru
      _
    // Predicated region
    $region34: #{tpu_custom_call.1} parent=1 // pred_check
      _
    $region35: #{tpu_custom_call.1} parent=1 // pred_check_branch
      %36 = sbr.rel (0) target = $region37
    $region36: #{tpu_custom_call.1} parent=1 // pred_region
      _
    $region37: #{tpu_custom_call.1} parent=1 // pred_fallthru
      _
    // Predicated region
    $region38: #{tpu_custom_call.1} parent=1 // pred_check
      _
    $region39: #{tpu_custom_call.1} parent=1 // pred_check_branch
      %38 = sbr.rel (0) target = $region41
    $region40: #{tpu_custom_call.1} parent=1 // pred_region
      _
    $region41: #{tpu_custom_call.1} parent=1 // pred_fallthru
      _
    // Predicated region
    $region42: #{tpu_custom_call.1} parent=1 // pred_check
      _
    $region43: #{tpu_custom_call.1} parent=1 // pred_check_branch
      %40 = sbr.rel (0) target = $region45
    $region44: #{tpu_custom_call.1} parent=1 // pred_region
      _
    $region45: #{tpu_custom_call.1} parent=1 // pred_fallthru
      _
    // Predicated region
    $region46: #{tpu_custom_call.1} parent=1 // pred_check
      _
    $region47: #{tpu_custom_call.1} parent=1 // pred_check_branch
      %42 = sbr.rel (0) target = $region49
    $region48: #{tpu_custom_call.1} parent=1 // pred_region
      _
    $region49: #{tpu_custom_call.1} parent=1 // pred_fallthru
      _
    // Predicated region
    $region50: #{tpu_custom_call.1} parent=1 // pred_check
      _
    $region51: #{tpu_custom_call.1} parent=1 // pred_check_branch
      %44 = sbr.rel (0) target = $region53
    $region52: #{tpu_custom_call.1} parent=1 // pred_region
      _
    $region53: #{tpu_custom_call.1} parent=1 // pred_fallthru
      _
    %v45 = vld [vmem:[%s0] sm:$0xff]
    %v46 = vld [vmem:[%s0 + $0x8] sm:$0xff]
    %v47 = vld [vmem:[%s1] sm:$0x1]
    %v48 = vld [vmem:[%s2] sm:$0x1]
    %vm49 = vcmask 261120
    %v50 = vsel %vm49, %v45, 0.0
    %51 = vadd.xlane.f32.xlu0 %v50
    %v52 = vpop.xlane.xlu0 %51
    %v53 = vsel %vm49, %v46, 0.0
    %54 = vadd.xlane.f32.xlu0 %v53
    %v55 = vpop.xlane.xlu0 %54
    %v56 = vrcp.pop 32.0
    %v57 = vmul.f32 32.0, %v56
    %v58 = vsub.f32 1.0, %v57
    %v59 = vmul.f32 %v56, %v58
    %v60 = vadd.f32 %v56, %v59
    %vm61 = vweird.f32 %v56
    %v62 = vsel %vm61, %v56, %v60
    %v63 = vmul.f32 %v52, %v62
    %v64 = vmul.f32 %v55, %v62
    %v65 = vsub.f32 %v45, %v63
    %v66 = vsub.f32 %v46, %v64
    %v67 = vmul.f32 %v65, %v65
    %v68 = vmul.f32 %v66, %v66
    %v69 = vsel %vm49, %v67, 0.0
    %70 = vadd.xlane.f32.xlu0 %v69
    %v71 = vpop.xlane.xlu0 %70
    %v72 = vsel %vm49, %v68, 0.0
    %73 = vadd.xlane.f32.xlu0 %v72
    %v74 = vpop.xlane.xlu0 %73
    %v75 = vmul.f32 %v71, %v62
    %v76 = vmul.f32 %v74, %v62
    %v77 = vadd.f32 %v75, 1e-05
    %v78 = vadd.f32 %v76, 1e-05
    %v79 = vrsqrt.pop %v77
    %v80 = vmul.f32 %v79, %v77
    %v81 = vmul.f32 %v80, %v79
    %v82 = vmul.f32 0.5, %v81
    %v83 = vsub.f32 1.5, %v82
    %v84 = vmul.f32 %v79, %v83
    %vm85 = vweird.f32 %v77
    %vm86 = vweird.f32 %v79
    %vm87 = vmor %vm85, %vm86
    %v88 = vsel %vm87, %v79, %v84
    %v89 = vrsqrt.pop %v78
    %v90 = vmul.f32 %v89, %v78
    %v91 = vmul.f32 %v90, %v89
    %v92 = vmul.f32 0.5, %v91
    %v93 = vsub.f32 1.5, %v92
    %v94 = vmul.f32 %v89, %v93
    %vm95 = vweird.f32 %v78
    %vm96 = vweird.f32 %v89
    %vm97 = vmor %vm95, %vm96
    %v98 = vsel %vm97, %v89, %v94
    %v99 = vmul.f32 %v65, %v88
    %v100 = vmul.f32 %v66, %v98
    %v102 = vperm.slane %v47, 0
    %v104 = vmul.f32 %v99, %v102
    %v105 = vmul.f32 %v100, %v102
    %v107 = vperm.slane %v48, 0
    %v109 = vadd.f32 %v104, %v107
    %v110 = vadd.f32 %v105, %v107
    %v111 = vld [vmem:[%s3] sm:$0xff]
    %v112 = vld [vmem:[%s3 + $0x8] sm:$0xff]
    %v113 = vld [vmem:[%s4] sm:$0xff]
    %v114 = vld [vmem:[%s4 + $0x8] sm:$0xff]
    %v115 = vld [vmem:[%s5] sm:$0xff]
    %v116 = vld [vmem:[%s6] sm:$0xff]
    %118 = vset.pattern.permute.xlu0 0
    %119 = vperm.xlu0 %118, %v113
    %v120 = vpop.permute.xlu0 %119
    %123 = vset.pattern.permute.xlu0 0
    %124 = vperm.xlu0 %123, %v114
    %v125 = vpop.permute.xlu0 %124
    %vm127 = vcmask 64512
    %v129 = vsel %vm127, %v111, 0
    %v132 = vsel %vm127, %v112, 0
    %134 = vmatpush.msra.mxu0 0.0
    %135 = vmatpush.msra.mxu0 0.0
    %136 = vmatpush.msra.mxu0 0.0
    %137 = vmatpush.msra.mxu0 0.0
    %138 = vmatpush.msra.mxu0 0.0
    %139 = vmatpush.msra.mxu0 0.0
    %140 = vmatpush.msra.mxu0 0.0
    %141 = vmatpush.msra.mxu0 0.0
    %142 = vmatpush.msra.mxu0 0.0
    %143 = vmatpush.msra.mxu0 0.0
    %144 = vmatpush.msra.mxu0 0.0
    %145 = vmatpush.msra.mxu0 0.0
    %146 = vmatpush.msra.mxu0 0.0
    %147 = vmatpush.msra.mxu0 0.0
    %148 = vmatpush.msra.mxu0 0.0
    %149 = vmatpush.msra.mxu0 %v109
    %150 = vmatmul.f32.gmra.mxu0 %v129
    %v151 = vpop.f32.mrf.mxu0
    %v152 = vadd.f32 %v120, %v151
    %153 = vmatmul.f32.gmra.mxu0 %v132
    %v154 = vpop.f32.mrf.mxu0
    %v155 = vadd.f32 %v125, %v154
    %156 = vdwg.mxu0
    %v157 = vmul.f32 %v152, 0.5
    %v158 = vmul.f32 %v155, 0.5
    %v159 = vmul.f32 %v152, 0.70710677
    %v160 = vmul.f32 %v155, 0.70710677
    %v161 = vmul.f32 %v159, %v159
    %v162 = vmin.f32 16.0, %v161
    %v163 = vmul.f32 %v162, 2.1237322e-06
    %v164 = vadd.f32 %v163, 0.00028619796
    %v165 = vmul.f32 %v162, %v164
    %v166 = vadd.f32 %v165, 0.0036580483
    %v167 = vmul.f32 %v162, %v166
    %v168 = vadd.f32 %v167, 0.05243302
    %v169 = vmul.f32 %v162, %v168
    %v170 = vadd.f32 %v169, 0.18741608
    %v171 = vmul.f32 %v162, %v170
    %v172 = vadd.f32 %v171, 1.1283791
    %v173 = vmul.f32 %v159, %v172
    %v174 = vmul.f32 %v162, 3.8918573e-05
    %v175 = vadd.f32 %v174, 0.001143296
    %v176 = vmul.f32 %v162, %v175
    %v177 = vadd.f32 %v176, 0.014752088
    %v178 = vmul.f32 %v162, %v177
    %v179 = vadd.f32 %v178, 0.112945676
    %v180 = vmul.f32 %v162, %v179
    %v181 = vadd.f32 %v180, 0.4994258
    %v182 = vmul.f32 %v162, %v181
    %v183 = vadd.f32 %v182, 1.0
    %v184 = vrcp.pop %v183
    %v185 = vmul.f32 %v183, %v184
    %v186 = vsub.f32 1.0, %v185
    %v187 = vmul.f32 %v184, %v186
    %v188 = vadd.f32 %v184, %v187
    %vm189 = vweird.f32 %v183
    %vm190 = vweird.f32 %v184
    %vm191 = vmor %vm189, %vm190
    %v192 = vsel %vm191, %v184, %v188
    %v193 = vand.u32 2147483647, %v183
    %vm194 = vcmp.eq.f32.partialorder %v193, 8.507059e+37
    %v195 = vand.u32 %v183, 2147483648
    %v196 = vor.u32 1.1754944e-38, %v195
    %v197 = vsel %vm194, %v196, %v192
    %v198 = vmul.f32 %v173, %v197
    %v199 = vmin.f32 %v198, 1.0
    %v200 = vmax.f32 %v199, -1.0
    %v201 = vmul.f32 %v160, %v160
    %v202 = vmin.f32 16.0, %v201
    %v203 = vmul.f32 %v202, 2.1237322e-06
    %v204 = vadd.f32 %v203, 0.00028619796
    %v205 = vmul.f32 %v202, %v204
    %v206 = vadd.f32 %v205, 0.0036580483
    %v207 = vmul.f32 %v202, %v206
    %v208 = vadd.f32 %v207, 0.05243302
    %v209 = vmul.f32 %v202, %v208
    %v210 = vadd.f32 %v209, 0.18741608
    %v211 = vmul.f32 %v202, %v210
    %v212 = vadd.f32 %v211, 1.1283791
    %v213 = vmul.f32 %v160, %v212
    %v214 = vmul.f32 %v202, 3.8918573e-05
    %v215 = vadd.f32 %v214, 0.001143296
    %v216 = vmul.f32 %v202, %v215
    %v217 = vadd.f32 %v216, 0.014752088
    %v218 = vmul.f32 %v202, %v217
    %v219 = vadd.f32 %v218, 0.112945676
    %v220 = vmul.f32 %v202, %v219
    %v221 = vadd.f32 %v220, 0.4994258
    %v222 = vmul.f32 %v202, %v221
    %v223 = vadd.f32 %v222, 1.0
    %v224 = vrcp.pop %v223
    %v225 = vmul.f32 %v223, %v224
    %v226 = vsub.f32 1.0, %v225
    %v227 = vmul.f32 %v224, %v226
    %v228 = vadd.f32 %v224, %v227
    %vm229 = vweird.f32 %v223
    %vm230 = vweird.f32 %v224
    %vm231 = vmor %vm229, %vm230
    %v232 = vsel %vm231, %v224, %v228
    %v233 = vand.u32 2147483647, %v223
    %vm234 = vcmp.eq.f32.partialorder %v233, 8.507059e+37
    %v235 = vand.u32 %v223, 2147483648
    %v236 = vor.u32 1.1754944e-38, %v235
    %v237 = vsel %vm234, %v236, %v232
    %v238 = vmul.f32 %v213, %v237
    %v239 = vmin.f32 %v238, 1.0
    %v240 = vmax.f32 %v239, -1.0
    %v241 = vadd.f32 %v200, 1.0
    %v242 = vadd.f32 %v240, 1.0
    %v243 = vmul.f32 %v157, %v241
    %v244 = vmul.f32 %v158, %v242
    %246 = vset.pattern.permute.xlu0 0
    %247 = vperm.xlu0 %246, %v116
    %v248 = vpop.permute.xlu0 %247
    %vm250 = vcmask 130048
    %v252 = vsel %vm250, %v115, 0
    %254 = vmatpush.msra.mxu0 0.0
    %255 = vmatpush.msra.mxu0 0.0
    %256 = vmatpush.msra.mxu0 0.0
    %257 = vmatpush.msra.mxu0 0.0
    %258 = vmatpush.msra.mxu0 0.0
    %259 = vmatpush.msra.mxu0 0.0
    %260 = vmatpush.msra.mxu0 0.0
    %261 = vmatpush.msra.mxu0 0.0
    %262 = vmatpush.msra.mxu0 0.0
    %263 = vmatpush.msra.mxu0 0.0
    %264 = vmatpush.msra.mxu0 0.0
    %265 = vmatpush.msra.mxu0 0.0
    %266 = vmatpush.msra.mxu0 0.0
    %267 = vmatpush.msra.mxu0 0.0
    %268 = vmatpush.msra.mxu0 %v244
    %269 = vmatpush.msra.mxu0 %v243
    %270 = vmatmul.f32.gmra.mxu0 %v252
    %v271 = vpop.f32.mrf.mxu0
    %v272 = vadd.f32 %v248, %v271
    %273 = vdwg.mxu0
    %274 = vmatpush.msra.mxu0 0.0
    %275 = vmatpush.msra.mxu0 0.0
    %276 = vmatpush.msra.mxu0 0.0
    %277 = vmatpush.msra.mxu0 0.0
    %278 = vmatpush.msra.mxu0 0.0
    %279 = vmatpush.msra.mxu0 0.0
    %280 = vmatpush.msra.mxu0 0.0
    %281 = vmatpush.msra.mxu0 0.0
    %282 = vmatpush.msra.mxu0 0.0
    %283 = vmatpush.msra.mxu0 0.0
    %284 = vmatpush.msra.mxu0 0.0
    %285 = vmatpush.msra.mxu0 0.0
    %286 = vmatpush.msra.mxu0 0.0
    %287 = vmatpush.msra.mxu0 0.0
    %288 = vmatpush.msra.mxu0 0.0
    %289 = vmatpush.msra.mxu0 %v110
    %290 = vmatmul.f32.gmra.mxu0 %v129
    %v291 = vpop.f32.mrf.mxu0
    %v292 = vadd.f32 %v120, %v291
    %293 = vmatmul.f32.gmra.mxu0 %v132
    %v294 = vpop.f32.mrf.mxu0
    %v295 = vadd.f32 %v125, %v294
    %296 = vdwg.mxu0
    %v297 = vmul.f32 %v292, 0.5
    %v298 = vmul.f32 %v295, 0.5
    %v299 = vmul.f32 %v292, 0.70710677
    %v300 = vmul.f32 %v295, 0.70710677
    %v301 = vmul.f32 %v299, %v299
    %v302 = vmin.f32 16.0, %v301
    %v303 = vmul.f32 %v302, 2.1237322e-06
    %v304 = vadd.f32 %v303, 0.00028619796
    %v305 = vmul.f32 %v302, %v304
    %v306 = vadd.f32 %v305, 0.0036580483
    %v307 = vmul.f32 %v302, %v306
    %v308 = vadd.f32 %v307, 0.05243302
    %v309 = vmul.f32 %v302, %v308
    %v310 = vadd.f32 %v309, 0.18741608
    %v311 = vmul.f32 %v302, %v310
    %v312 = vadd.f32 %v311, 1.1283791
    %v313 = vmul.f32 %v299, %v312
    %v314 = vmul.f32 %v302, 3.8918573e-05
    %v315 = vadd.f32 %v314, 0.001143296
    %v316 = vmul.f32 %v302, %v315
    %v317 = vadd.f32 %v316, 0.014752088
    %v318 = vmul.f32 %v302, %v317
    %v319 = vadd.f32 %v318, 0.112945676
    %v320 = vmul.f32 %v302, %v319
    %v321 = vadd.f32 %v320, 0.4994258
    %v322 = vmul.f32 %v302, %v321
    %v323 = vadd.f32 %v322, 1.0
    %v324 = vrcp.pop %v323
    %v325 = vmul.f32 %v323, %v324
    %v326 = vsub.f32 1.0, %v325
    %v327 = vmul.f32 %v324, %v326
    %v328 = vadd.f32 %v324, %v327
    %vm329 = vweird.f32 %v323
    %vm330 = vweird.f32 %v324
    %vm331 = vmor %vm329, %vm330
    %v332 = vsel %vm331, %v324, %v328
    %v333 = vand.u32 2147483647, %v323
    %vm334 = vcmp.eq.f32.partialorder %v333, 8.507059e+37
    %v335 = vand.u32 %v323, 2147483648
    %v336 = vor.u32 1.1754944e-38, %v335
    %v337 = vsel %vm334, %v336, %v332
    %v338 = vmul.f32 %v313, %v337
    %v339 = vmin.f32 %v338, 1.0
    %v340 = vmax.f32 %v339, -1.0
    %v341 = vmul.f32 %v300, %v300
    %v342 = vmin.f32 16.0, %v341
    %v343 = vmul.f32 %v342, 2.1237322e-06
    %v344 = vadd.f32 %v343, 0.00028619796
    %v345 = vmul.f32 %v342, %v344
    %v346 = vadd.f32 %v345, 0.0036580483
    %v347 = vmul.f32 %v342, %v346
    %v348 = vadd.f32 %v347, 0.05243302
    %v349 = vmul.f32 %v342, %v348
    %v350 = vadd.f32 %v349, 0.18741608
    %v351 = vmul.f32 %v342, %v350
    %v352 = vadd.f32 %v351, 1.1283791
    %v353 = vmul.f32 %v300, %v352
    %v354 = vmul.f32 %v342, 3.8918573e-05
    %v355 = vadd.f32 %v354, 0.001143296
    %v356 = vmul.f32 %v342, %v355
    %v357 = vadd.f32 %v356, 0.014752088
    %v358 = vmul.f32 %v342, %v357
    %v359 = vadd.f32 %v358, 0.112945676
    %v360 = vmul.f32 %v342, %v359
    %v361 = vadd.f32 %v360, 0.4994258
    %v362 = vmul.f32 %v342, %v361
    %v363 = vadd.f32 %v362, 1.0
    %v364 = vrcp.pop %v363
    %v365 = vmul.f32 %v363, %v364
    %v366 = vsub.f32 1.0, %v365
    %v367 = vmul.f32 %v364, %v366
    %v368 = vadd.f32 %v364, %v367
    %vm369 = vweird.f32 %v363
    %vm370 = vweird.f32 %v364
    %vm371 = vmor %vm369, %vm370
    %v372 = vsel %vm371, %v364, %v368
    %v373 = vand.u32 2147483647, %v363
    %vm374 = vcmp.eq.f32.partialorder %v373, 8.507059e+37
    %v375 = vand.u32 %v363, 2147483648
    %v376 = vor.u32 1.1754944e-38, %v375
    %v377 = vsel %vm374, %v376, %v372
    %v378 = vmul.f32 %v353, %v377
    %v379 = vmin.f32 %v378, 1.0
    %v380 = vmax.f32 %v379, -1.0
    %v381 = vadd.f32 %v340, 1.0
    %v382 = vadd.f32 %v380, 1.0
    %v383 = vmul.f32 %v297, %v381
    %v384 = vmul.f32 %v298, %v382
    %385 = vmatpush.msra.mxu0 0.0
    %386 = vmatpush.msra.mxu0 0.0
    %387 = vmatpush.msra.mxu0 0.0
    %388 = vmatpush.msra.mxu0 0.0
    %389 = vmatpush.msra.mxu0 0.0
    %390 = vmatpush.msra.mxu0 0.0
    %391 = vmatpush.msra.mxu0 0.0
    %392 = vmatpush.msra.mxu0 0.0
    %393 = vmatpush.msra.mxu0 0.0
    %394 = vmatpush.msra.mxu0 0.0
    %395 = vmatpush.msra.mxu0 0.0
    %396 = vmatpush.msra.mxu0 0.0
    %397 = vmatpush.msra.mxu0 0.0
    %398 = vmatpush.msra.mxu0 0.0
    %399 = vmatpush.msra.mxu0 %v384
    %400 = vmatpush.msra.mxu0 %v383
    %401 = vmatmul.f32.gmra.mxu0 %v252
    %v402 = vpop.f32.mrf.mxu0
    %v403 = vadd.f32 %v248, %v402
    %404 = vdwg.mxu0
    %v405 = vadd.f32 %v45, %v272
    %v406 = vadd.f32 %v46, %v403
    %v407 = vld [vmem:[%s7] sm:$0x1]
    %v408 = vld [vmem:[%s8] sm:$0x1]
    %v409 = vsel %vm49, %v405, 0.0
    %410 = vadd.xlane.f32.xlu0 %v409
    %v411 = vpop.xlane.xlu0 %410
    %v412 = vsel %vm49, %v406, 0.0
    %413 = vadd.xlane.f32.xlu0 %v412
    %v414 = vpop.xlane.xlu0 %413
    %v415 = vmul.f32 %v411, %v62
    %v416 = vmul.f32 %v414, %v62
    %v417 = vsub.f32 %v405, %v415
    %v418 = vsub.f32 %v406, %v416
    %v419 = vmul.f32 %v417, %v417
    %v420 = vmul.f32 %v418, %v418
    %v421 = vsel %vm49, %v419, 0.0
    %422 = vadd.xlane.f32.xlu0 %v421
    %v423 = vpop.xlane.xlu0 %422
    %v424 = vsel %vm49, %v420, 0.0
    %425 = vadd.xlane.f32.xlu0 %v424
    %v426 = vpop.xlane.xlu0 %425
    %v427 = vmul.f32 %v423, %v62
    %v428 = vmul.f32 %v426, %v62
    %v429 = vadd.f32 %v427, 1e-05
    %v430 = vadd.f32 %v428, 1e-05
    %v431 = vrsqrt.pop %v429
    %v432 = vmul.f32 %v431, %v429
    %v433 = vmul.f32 %v432, %v431
    %v434 = vmul.f32 0.5, %v433
    %v435 = vsub.f32 1.5, %v434
    %v436 = vmul.f32 %v431, %v435
    %vm437 = vweird.f32 %v429
    %vm438 = vweird.f32 %v431
    %vm439 = vmor %vm437, %vm438
    %v440 = vsel %vm439, %v431, %v436
    %v441 = vrsqrt.pop %v430
    %v442 = vmul.f32 %v441, %v430
    %v443 = vmul.f32 %v442, %v441
    %v444 = vmul.f32 0.5, %v443
    %v445 = vsub.f32 1.5, %v444
    %v446 = vmul.f32 %v441, %v445
    %vm447 = vweird.f32 %v430
    %vm448 = vweird.f32 %v441
    %vm449 = vmor %vm447, %vm448
    %v450 = vsel %vm449, %v441, %v446
    %v451 = vmul.f32 %v417, %v440
    %v452 = vmul.f32 %v418, %v450
    %v454 = vperm.slane %v407, 0
    %v456 = vmul.f32 %v451, %v454
    %v457 = vmul.f32 %v452, %v454
    %v459 = vperm.slane %v408, 0
    %v461 = vadd.f32 %v456, %v459
    %v462 = vadd.f32 %v457, %v459
    %v463 = vld [vmem:[%s9] sm:$0xff]
    %v464 = vld [vmem:[%s9 + $0x8] sm:$0xff]
    %v465 = vld [vmem:[%s9 + $0x10] sm:$0xff]
    %v466 = vld [vmem:[%s9 + $0x18] sm:$0xff]
    %v467 = vld [vmem:[%s10] sm:$0x1]
    %v469 = vperm.slane %v467, 0
    %v472 = vsel %vm49, %v461, 0
    %v475 = vsel %vm49, %v462, 0
    %477 = vmatpush.msra.mxu0 0.0
    %478 = vmatpush.msra.mxu0 0.0
    %479 = vmatpush.msra.mxu0 0.0
    %480 = vmatpush.msra.mxu0 0.0
    %481 = vmatpush.msra.mxu0 0.0
    %482 = vmatpush.msra.mxu0 0.0
    %483 = vmatpush.msra.mxu0 0.0
    %484 = vmatpush.msra.mxu0 0.0
    %485 = vmatpush.msra.mxu0 0.0
    %486 = vmatpush.msra.mxu0 0.0
    %487 = vmatpush.msra.mxu0 0.0
    %488 = vmatpush.msra.mxu0 0.0
    %489 = vmatpush.msra.mxu0 %v466
    %490 = vmatpush.msra.mxu0 %v465
    %491 = vmatpush.msra.mxu0 %v464
    %492 = vmatpush.msra.mxu0 %v463
    %493 = vmatmul.f32.gmra.mxu0 %v472
    %v494 = vpop.f32.mrf.mxu0
    %v495 = vadd.f32 %v469, %v494
    %496 = vmatmul.f32.gmra.mxu0 %v475
    %v497 = vpop.f32.mrf.mxu0
    %v498 = vadd.f32 %v469, %v497
    %499 = vdwg.mxu0
    %v500 = vmul.f32 %v495, 0.5
    %v501 = vmul.f32 %v498, 0.5
    %v502 = vmul.f32 %v495, 0.70710677
    %v503 = vmul.f32 %v498, 0.70710677
    %v504 = vmul.f32 %v502, %v502
    %v505 = vmin.f32 16.0, %v504
    %v506 = vmul.f32 %v505, 2.1237322e-06
    %v507 = vadd.f32 %v506, 0.00028619796
    %v508 = vmul.f32 %v505, %v507
    %v509 = vadd.f32 %v508, 0.0036580483
    %v510 = vmul.f32 %v505, %v509
    %v511 = vadd.f32 %v510, 0.05243302
    %v512 = vmul.f32 %v505, %v511
    %v513 = vadd.f32 %v512, 0.18741608
    %v514 = vmul.f32 %v505, %v513
    %v515 = vadd.f32 %v514, 1.1283791
    %v516 = vmul.f32 %v502, %v515
    %v517 = vmul.f32 %v505, 3.8918573e-05
    %v518 = vadd.f32 %v517, 0.001143296
    %v519 = vmul.f32 %v505, %v518
    %v520 = vadd.f32 %v519, 0.014752088
    %v521 = vmul.f32 %v505, %v520
    %v522 = vadd.f32 %v521, 0.112945676
    %v523 = vmul.f32 %v505, %v522
    %v524 = vadd.f32 %v523, 0.4994258
    %v525 = vmul.f32 %v505, %v524
    %v526 = vadd.f32 %v525, 1.0
    %v527 = vrcp.pop %v526
    %v528 = vmul.f32 %v526, %v527
    %v529 = vsub.f32 1.0, %v528
    %v530 = vmul.f32 %v527, %v529
    %v531 = vadd.f32 %v527, %v530
    %vm532 = vweird.f32 %v526
    %vm533 = vweird.f32 %v527
    %vm534 = vmor %vm532, %vm533
    %v535 = vsel %vm534, %v527, %v531
    %v536 = vand.u32 2147483647, %v526
    %vm537 = vcmp.eq.f32.partialorder %v536, 8.507059e+37
    %v538 = vand.u32 %v526, 2147483648
    %v539 = vor.u32 1.1754944e-38, %v538
    %v540 = vsel %vm537, %v539, %v535
    %v541 = vmul.f32 %v516, %v540
    %v542 = vmin.f32 %v541, 1.0
    %v543 = vmax.f32 %v542, -1.0
    %v544 = vmul.f32 %v503, %v503
    %v545 = vmin.f32 16.0, %v544
    %v546 = vmul.f32 %v545, 2.1237322e-06
    %v547 = vadd.f32 %v546, 0.00028619796
    %v548 = vmul.f32 %v545, %v547
    %v549 = vadd.f32 %v548, 0.0036580483
    %v550 = vmul.f32 %v545, %v549
    %v551 = vadd.f32 %v550, 0.05243302
    %v552 = vmul.f32 %v545, %v551
    %v553 = vadd.f32 %v552, 0.18741608
    %v554 = vmul.f32 %v545, %v553
    %v555 = vadd.f32 %v554, 1.1283791
    %v556 = vmul.f32 %v503, %v555
    %v557 = vmul.f32 %v545, 3.8918573e-05
    %v558 = vadd.f32 %v557, 0.001143296
    %v559 = vmul.f32 %v545, %v558
    %v560 = vadd.f32 %v559, 0.014752088
    %v561 = vmul.f32 %v545, %v560
    %v562 = vadd.f32 %v561, 0.112945676
    %v563 = vmul.f32 %v545, %v562
    %v564 = vadd.f32 %v563, 0.4994258
    %v565 = vmul.f32 %v545, %v564
    %v566 = vadd.f32 %v565, 1.0
    %v567 = vrcp.pop %v566
    %v568 = vmul.f32 %v566, %v567
    %v569 = vsub.f32 1.0, %v568
    %v570 = vmul.f32 %v567, %v569
    %v571 = vadd.f32 %v567, %v570
    %vm572 = vweird.f32 %v566
    %vm573 = vweird.f32 %v567
    %vm574 = vmor %vm572, %vm573
    %v575 = vsel %vm574, %v567, %v571
    %v576 = vand.u32 2147483647, %v566
    %vm577 = vcmp.eq.f32.partialorder %v576, 8.507059e+37
    %v578 = vand.u32 %v566, 2147483648
    %v579 = vor.u32 1.1754944e-38, %v578
    %v580 = vsel %vm577, %v579, %v575
    %v581 = vmul.f32 %v556, %v580
    %v582 = vmin.f32 %v581, 1.0
    %v583 = vmax.f32 %v582, -1.0
    %v584 = vadd.f32 %v543, 1.0
    %v585 = vadd.f32 %v583, 1.0
    %v586 = vmul.f32 %v500, %v584
    %v587 = vmul.f32 %v501, %v585
    %v588 = vld [vmem:[%s11] sm:$0xff]
    %v589 = vld [vmem:[%s11 + $0x8] sm:$0xff]
    %v590 = vld [vmem:[%s11 + $0x10] sm:$0xff]
    %v591 = vld [vmem:[%s11 + $0x18] sm:$0xff]
    %v592 = vld [vmem:[%s11 + $0x20] sm:$0xff]
    %v593 = vld [vmem:[%s11 + $0x28] sm:$0xff]
    %v594 = vld [vmem:[%s11 + $0x30] sm:$0xff]
    %v595 = vld [vmem:[%s11 + $0x38] sm:$0xff]
    %v596 = vld [vmem:[%s12] sm:$0x1]
    %v598 = vperm.slane %v596, 0
    %vm600 = vcmask 523264
    %v602 = vsel %vm600, %v586, 0
    %v605 = vsel %vm600, %v587, 0
    %607 = vmatpush.msra.mxu0 0.0
    %608 = vmatpush.msra.mxu0 0.0
    %609 = vmatpush.msra.mxu0 0.0
    %610 = vmatpush.msra.mxu0 0.0
    %611 = vmatpush.msra.mxu0 0.0
    %612 = vmatpush.msra.mxu0 0.0
    %613 = vmatpush.msra.mxu0 0.0
    %614 = vmatpush.msra.mxu0 0.0
    %615 = vmatpush.msra.mxu0 %v595
    %616 = vmatpush.msra.mxu0 %v594
    %617 = vmatpush.msra.mxu0 %v593
    %618 = vmatpush.msra.mxu0 %v592
    %619 = vmatpush.msra.mxu0 %v591
    %620 = vmatpush.msra.mxu0 %v590
    %621 = vmatpush.msra.mxu0 %v589
    %622 = vmatpush.msra.mxu0 %v588
    %623 = vmatmul.f32.gmra.mxu0 %v602
    %v624 = vpop.f32.mrf.mxu0
    %v625 = vadd.f32 %v598, %v624
    %626 = vmatmul.f32.gmra.mxu0 %v605
    %v627 = vpop.f32.mrf.mxu0
    %v628 = vadd.f32 %v598, %v627
    %629 = vdwg.mxu0
    %v630 = vadd.f32 %v405, %v625
    %v631 = vadd.f32 %v406, %v628
    %632 = vst.msk [vmem:[#allocation2] sm:$0xff] %vm49, %v630
    %633 = vst.msk [vmem:[#allocation2 + $0x8] sm:$0xff] %vm49, %v631
    // Predicated region
    $region54: #{tpu_custom_call.1} parent=1 // pred_check
      _
    $region55: #{tpu_custom_call.1} parent=1 // pred_check_branch
      %635 = sbr.rel (0) target = $region57
    $region56: #{tpu_custom_call.1} parent=1 // pred_region
      %637 = vsyncadd [#allocation3], 0
      %s638 = sshll.u32 [#allocation2], 4
      %s639 = int_to_ptr.vmem [resolvable:$true] %s638
      %s640 = sshll.u32 %s13, 4
      %s641 = int_to_ptr.hbm [resolvable:$true] %s640
      %646 = dma.vmem_to_hbm [thread:$0]  %s639, 256, %s641, [#allocation3], 128, 128, 8
    $region57: #{tpu_custom_call.1} parent=1 // pred_fallthru
      _
    // Predicated region
    $region58: #{tpu_custom_call.1} parent=1 // pred_check
      _
    $region59: #{tpu_custom_call.1} parent=1 // pred_check_branch
      %648 = sbr.rel (0) target = $region61
    $region60: #{tpu_custom_call.1} parent=1 // pred_region
      %650 = dma.done [#allocation3], 256
    $region61: #{tpu_custom_call.1} parent=1 // pred_fallthru
      _
    %651 = vsyncpa [#allocation3], 1

// kernel: tpu_custom_call.1
$region0: #{tpu_custom_call.1}
  #allocation0 [shape = 'u32[]', space=smem, size = 0x4, offset = 0x4, fixed_abs, tag = 'smem constant byte address 0x4 - core index']
  #allocation1 [shape = 'u32[72,128]{1,0:T(1,128)}', space=vmem, size = 0x9000, scoped, tag = 'internal scratch']
  %s0 = inlined_call_operand.vmem [shape: f32[2,8,32], index: 0, kind: input, shape index: {}]
  %s1 = inlined_call_operand.vmem [shape: f32[1,32], index: 1, kind: input, shape index: {}]
  %s2 = inlined_call_operand.vmem [shape: f32[1,32], index: 2, kind: input, shape index: {}]
  %s3 = inlined_call_operand.vmem [shape: f32[16,8], index: 3, kind: input, shape index: {}]
  %s4 = inlined_call_operand.vmem [shape: f32[16,1], index: 4, kind: input, shape index: {}]
  %s5 = inlined_call_operand.vmem [shape: f32[8,16], index: 5, kind: input, shape index: {}]
  %s6 = inlined_call_operand.vmem [shape: f32[8,1], index: 6, kind: input, shape index: {}]
  %s7 = inlined_call_operand.vmem [shape: f32[1,32], index: 7, kind: input, shape index: {}]
  %s8 = inlined_call_operand.vmem [shape: f32[1,32], index: 8, kind: input, shape index: {}]
  %s9 = inlined_call_operand.vmem [shape: f32[32,64], index: 9, kind: input, shape index: {}]
  %s10 = inlined_call_operand.vmem [shape: f32[1,64], index: 10, kind: input, shape index: {}]
  %s11 = inlined_call_operand.vmem [shape: f32[64,32], index: 11, kind: input, shape index: {}]
  %s12 = inlined_call_operand.vmem [shape: f32[1,32], index: 12, kind: input, shape index: {}]
  %s13 = inlined_call_operand.hbm [shape: f32[2,8,32], index: 13, kind: output, shape index: {}]
  %s14 = sld [smem:[#allocation0]]
  $region62: #{tpu_custom_call.1} parent=0
    _
  %s16 = ssub.s32 1, %s14
  %s17 = scalar_select 0, %s16, %s14
  $region1: #{tpu_custom_call.1} parent=0
    #allocation2 [shape = 'u8[8192]{0}', space=vmem, size = 0x2000, scoped, tag = 'output window, operand 0, single buffered']
    #allocation3 [shape = 's32[1]{0}', space=sflag, size = 0x4, scoped, tag = 'scoped memory for tpu_custom_call.1']
    %18 = vsyncpa [#allocation3], 0
    // Predicated region
    $region2: #{tpu_custom_call.1} parent=1 // pred_check
      _
    $region3: #{tpu_custom_call.1} parent=1 // pred_check_branch
      %20 = sbr.rel (0) target = $region5
    $region4: #{tpu_custom_call.1} parent=1 // pred_region
      _
    $region5: #{tpu_custom_call.1} parent=1 // pred_fallthru
      _
    // Predicated region
    $region6: #{tpu_custom_call.1} parent=1 // pred_check
      _
    $region7: #{tpu_custom_call.1} parent=1 // pred_check_branch
      %22 = sbr.rel (0) target = $region9
    $region8: #{tpu_custom_call.1} parent=1 // pred_region
      _
    $region9: #{tpu_custom_call.1} parent=1 // pred_fallthru
      _
    // Predicated region
    $region10: #{tpu_custom_call.1} parent=1 // pred_check
      _
    $region11: #{tpu_custom_call.1} parent=1 // pred_check_branch
      %24 = sbr.rel (0) target = $region13
    $region12: #{tpu_custom_call.1} parent=1 // pred_region
      _
    $region13: #{tpu_custom_call.1} parent=1 // pred_fallthru
      _
    // Predicated region
    $region14: #{tpu_custom_call.1} parent=1 // pred_check
      _
    $region15: #{tpu_custom_call.1} parent=1 // pred_check_branch
      %26 = sbr.rel (0) target = $region17
    $region16: #{tpu_custom_call.1} parent=1 // pred_region
      _
    $region17: #{tpu_custom_call.1} parent=1 // pred_fallthru
      _
    // Predicated region
    $region18: #{tpu_custom_call.1} parent=1 // pred_check
      _
    $region19: #{tpu_custom_call.1} parent=1 // pred_check_branch
      %28 = sbr.rel (0) target = $region21
    $region20: #{tpu_custom_call.1} parent=1 // pred_region
      _
    $region21: #{tpu_custom_call.1} parent=1 // pred_fallthru
      _
    // Predicated region
    $region22: #{tpu_custom_call.1} parent=1 // pred_check
      _
    $region23: #{tpu_custom_call.1} parent=1 // pred_check_branch
      %30 = sbr.rel (0) target = $region25
    $region24: #{tpu_custom_call.1} parent=1 // pred_region
      _
    $region25: #{tpu_custom_call.1} parent=1 // pred_fallthru
      _
    // Predicated region
    $region26: #{tpu_custom_call.1} parent=1 // pred_check
      _
    $region27: #{tpu_custom_call.1} parent=1 // pred_check_branch
      %32 = sbr.rel (0) target = $region29
    $region28: #{tpu_custom_call.1} parent=1 // pred_region
      _
    $region29: #{tpu_custom_call.1} parent=1 // pred_fallthru
      _
    // Predicated region
    $region30: #{tpu_custom_call.1} parent=1 // pred_check
      _
    $region31: #{tpu_custom_call.1} parent=1 // pred_check_branch
      %34 = sbr.rel (0) target = $region33
    $region32: #{tpu_custom_call.1} parent=1 // pred_region
      _
    $region33: #{tpu_custom_call.1} parent=1 // pred_fallthru
      _
    // Predicated region
    $region34: #{tpu_custom_call.1} parent=1 // pred_check
      _
    $region35: #{tpu_custom_call.1} parent=1 // pred_check_branch
      %36 = sbr.rel (0) target = $region37
    $region36: #{tpu_custom_call.1} parent=1 // pred_region
      _
    $region37: #{tpu_custom_call.1} parent=1 // pred_fallthru
      _
    // Predicated region
    $region38: #{tpu_custom_call.1} parent=1 // pred_check
      _
    $region39: #{tpu_custom_call.1} parent=1 // pred_check_branch
      %38 = sbr.rel (0) target = $region41
    $region40: #{tpu_custom_call.1} parent=1 // pred_region
      _
    $region41: #{tpu_custom_call.1} parent=1 // pred_fallthru
      _
    // Predicated region
    $region42: #{tpu_custom_call.1} parent=1 // pred_check
      _
    $region43: #{tpu_custom_call.1} parent=1 // pred_check_branch
      %40 = sbr.rel (0) target = $region45
    $region44: #{tpu_custom_call.1} parent=1 // pred_region
      _
    $region45: #{tpu_custom_call.1} parent=1 // pred_fallthru
      _
    // Predicated region
    $region46: #{tpu_custom_call.1} parent=1 // pred_check
      _
    $region47: #{tpu_custom_call.1} parent=1 // pred_check_branch
      %42 = sbr.rel (0) target = $region49
    $region48: #{tpu_custom_call.1} parent=1 // pred_region
      _
    $region49: #{tpu_custom_call.1} parent=1 // pred_fallthru
      _
    // Predicated region
    $region50: #{tpu_custom_call.1} parent=1 // pred_check
      _
    $region51: #{tpu_custom_call.1} parent=1 // pred_check_branch
      %44 = sbr.rel (0) target = $region53
    $region52: #{tpu_custom_call.1} parent=1 // pred_region
      _
    $region53: #{tpu_custom_call.1} parent=1 // pred_fallthru
      _
    %v45 = vld [vmem:[%s0] sm:$0xff]
    %v46 = vld [vmem:[%s0 + $0x8] sm:$0xff]
    %v47 = vld [vmem:[%s1] sm:$0x1]
    %v48 = vld [vmem:[%s2] sm:$0x1]
    %vm49 = vcmask 261120
    %v50 = vsel %vm49, %v45, 0.0
    %51 = vadd.xlane.f32.xlu0 %v50
    %v52 = vpop.xlane.xlu0 %51
    %v53 = vsel %vm49, %v46, 0.0
    %54 = vadd.xlane.f32.xlu0 %v53
    %v55 = vpop.xlane.xlu0 %54
    %v56 = vrcp.pop 32.0
    %v57 = vmul.f32 32.0, %v56
    %v58 = vsub.f32 1.0, %v57
    %v59 = vmul.f32 %v56, %v58
    %v60 = vadd.f32 %v56, %v59
    %vm61 = vweird.f32 %v56
    %v62 = vsel %vm61, %v56, %v60
    %v63 = vmul.f32 %v52, %v62
    %v64 = vmul.f32 %v55, %v62
    %v65 = vsub.f32 %v45, %v63
    %v66 = vsub.f32 %v46, %v64
    %v67 = vmul.f32 %v65, %v65
    %v68 = vmul.f32 %v66, %v66
    %v69 = vsel %vm49, %v67, 0.0
    %70 = vadd.xlane.f32.xlu0 %v69
    %v71 = vpop.xlane.xlu0 %70
    %v72 = vsel %vm49, %v68, 0.0
    %73 = vadd.xlane.f32.xlu0 %v72
    %v74 = vpop.xlane.xlu0 %73
    %v75 = vmul.f32 %v71, %v62
    %v76 = vmul.f32 %v74, %v62
    %v77 = vadd.f32 %v75, 1e-05
    %v78 = vadd.f32 %v76, 1e-05
    %v79 = vrsqrt.pop %v77
    %v80 = vmul.f32 %v79, %v77
    %v81 = vmul.f32 %v80, %v79
    %v82 = vmul.f32 0.5, %v81
    %v83 = vsub.f32 1.5, %v82
    %v84 = vmul.f32 %v79, %v83
    %vm85 = vweird.f32 %v77
    %vm86 = vweird.f32 %v79
    %vm87 = vmor %vm85, %vm86
    %v88 = vsel %vm87, %v79, %v84
    %v89 = vrsqrt.pop %v78
    %v90 = vmul.f32 %v89, %v78
    %v91 = vmul.f32 %v90, %v89
    %v92 = vmul.f32 0.5, %v91
    %v93 = vsub.f32 1.5, %v92
    %v94 = vmul.f32 %v89, %v93
    %vm95 = vweird.f32 %v78
    %vm96 = vweird.f32 %v89
    %vm97 = vmor %vm95, %vm96
    %v98 = vsel %vm97, %v89, %v94
    %v99 = vmul.f32 %v65, %v88
    %v100 = vmul.f32 %v66, %v98
    %v102 = vperm.slane %v47, 0
    %v104 = vmul.f32 %v99, %v102
    %v105 = vmul.f32 %v100, %v102
    %v107 = vperm.slane %v48, 0
    %v109 = vadd.f32 %v104, %v107
    %v110 = vadd.f32 %v105, %v107
    %v111 = vld [vmem:[%s3] sm:$0xff]
    %v112 = vld [vmem:[%s3 + $0x8] sm:$0xff]
    %v113 = vld [vmem:[%s4] sm:$0xff]
    %v114 = vld [vmem:[%s4 + $0x8] sm:$0xff]
    %v115 = vld [vmem:[%s5] sm:$0xff]
    %v116 = vld [vmem:[%s6] sm:$0xff]
    %118 = vset.pattern.permute.xlu0 0
    %119 = vperm.xlu0 %118, %v113
    %v120 = vpop.permute.xlu0 %119
    %123 = vset.pattern.permute.xlu0 0
    %124 = vperm.xlu0 %123, %v114
    %v125 = vpop.permute.xlu0 %124
    %vm127 = vcmask 64512
    %v129 = vsel %vm127, %v111, 0
    %v132 = vsel %vm127, %v112, 0
    %134 = vmatpush.msra.mxu0 0.0
    %135 = vmatpush.msra.mxu0 0.0
    %136 = vmatpush.msra.mxu0 0.0
    %137 = vmatpush.msra.mxu0 0.0
    %138 = vmatpush.msra.mxu0 0.0
    %139 = vmatpush.msra.mxu0 0.0
    %140 = vmatpush.msra.mxu0 0.0
    %141 = vmatpush.msra.mxu0 0.0
    %142 = vmatpush.msra.mxu0 0.0
    %143 = vmatpush.msra.mxu0 0.0
    %144 = vmatpush.msra.mxu0 0.0
    %145 = vmatpush.msra.mxu0 0.0
    %146 = vmatpush.msra.mxu0 0.0
    %147 = vmatpush.msra.mxu0 0.0
    %148 = vmatpush.msra.mxu0 0.0
    %149 = vmatpush.msra.mxu0 %v109
    %150 = vmatmul.f32.gmra.mxu0 %v129
    %v151 = vpop.f32.mrf.mxu0
    %v152 = vadd.f32 %v120, %v151
    %153 = vmatmul.f32.gmra.mxu0 %v132
    %v154 = vpop.f32.mrf.mxu0
    %v155 = vadd.f32 %v125, %v154
    %156 = vdwg.mxu0
    %v157 = vmul.f32 %v152, 0.5
    %v158 = vmul.f32 %v155, 0.5
    %v159 = vmul.f32 %v152, 0.70710677
    %v160 = vmul.f32 %v155, 0.70710677
    %v161 = vmul.f32 %v159, %v159
    %v162 = vmin.f32 16.0, %v161
    %v163 = vmul.f32 %v162, 2.1237322e-06
    %v164 = vadd.f32 %v163, 0.00028619796
    %v165 = vmul.f32 %v162, %v164
    %v166 = vadd.f32 %v165, 0.0036580483
    %v167 = vmul.f32 %v162, %v166
    %v168 = vadd.f32 %v167, 0.05243302
    %v169 = vmul.f32 %v162, %v168
    %v170 = vadd.f32 %v169, 0.18741608
    %v171 = vmul.f32 %v162, %v170
    %v172 = vadd.f32 %v171, 1.1283791
    %v173 = vmul.f32 %v159, %v172
    %v174 = vmul.f32 %v162, 3.8918573e-05
    %v175 = vadd.f32 %v174, 0.001143296
    %v176 = vmul.f32 %v162, %v175
    %v177 = vadd.f32 %v176, 0.014752088
    %v178 = vmul.f32 %v162, %v177
    %v179 = vadd.f32 %v178, 0.112945676
    %v180 = vmul.f32 %v162, %v179
    %v181 = vadd.f32 %v180, 0.4994258
    %v182 = vmul.f32 %v162, %v181
    %v183 = vadd.f32 %v182, 1.0
    %v184 = vrcp.pop %v183
    %v185 = vmul.f32 %v183, %v184
    %v186 = vsub.f32 1.0, %v185
    %v187 = vmul.f32 %v184, %v186
    %v188 = vadd.f32 %v184, %v187
    %vm189 = vweird.f32 %v183
    %vm190 = vweird.f32 %v184
    %vm191 = vmor %vm189, %vm190
    %v192 = vsel %vm191, %v184, %v188
    %v193 = vand.u32 2147483647, %v183
    %vm194 = vcmp.eq.f32.partialorder %v193, 8.507059e+37
    %v195 = vand.u32 %v183, 2147483648
    %v196 = vor.u32 1.1754944e-38, %v195
    %v197 = vsel %vm194, %v196, %v192
    %v198 = vmul.f32 %v173, %v197
    %v199 = vmin.f32 %v198, 1.0
    %v200 = vmax.f32 %v199, -1.0
    %v201 = vmul.f32 %v160, %v160
    %v202 = vmin.f32 16.0, %v201
    %v203 = vmul.f32 %v202, 2.1237322e-06
    %v204 = vadd.f32 %v203, 0.00028619796
    %v205 = vmul.f32 %v202, %v204
    %v206 = vadd.f32 %v205, 0.0036580483
    %v207 = vmul.f32 %v202, %v206
    %v208 = vadd.f32 %v207, 0.05243302
    %v209 = vmul.f32 %v202, %v208
    %v210 = vadd.f32 %v209, 0.18741608
    %v211 = vmul.f32 %v202, %v210
    %v212 = vadd.f32 %v211, 1.1283791
    %v213 = vmul.f32 %v160, %v212
    %v214 = vmul.f32 %v202, 3.8918573e-05
    %v215 = vadd.f32 %v214, 0.001143296
    %v216 = vmul.f32 %v202, %v215
    %v217 = vadd.f32 %v216, 0.014752088
    %v218 = vmul.f32 %v202, %v217
    %v219 = vadd.f32 %v218, 0.112945676
    %v220 = vmul.f32 %v202, %v219
    %v221 = vadd.f32 %v220, 0.4994258
    %v222 = vmul.f32 %v202, %v221
    %v223 = vadd.f32 %v222, 1.0
    %v224 = vrcp.pop %v223
    %v225 = vmul.f32 %v223, %v224
    %v226 = vsub.f32 1.0, %v225
    %v227 = vmul.f32 %v224, %v226
    %v228 = vadd.f32 %v224, %v227
    %vm229 = vweird.f32 %v223
    %vm230 = vweird.f32 %v224
    %vm231 = vmor %vm229, %vm230
    %v232 = vsel %vm231, %v224, %v228
    %v233 = vand.u32 2147483647, %v223
    %vm234 = vcmp.eq.f32.partialorder %v233, 8.507059e+37
    %v235 = vand.u32 %v223, 2147483648
    %v236 = vor.u32 1.1754944e-38, %v235
    %v237 = vsel %vm234, %v236, %v232
    %v238 = vmul.f32 %v213, %v237
    %v239 = vmin.f32 %v238, 1.0
    %v240 = vmax.f32 %v239, -1.0
    %v241 = vadd.f32 %v200, 1.0
    %v242 = vadd.f32 %v240, 1.0
    %v243 = vmul.f32 %v157, %v241
    %v244 = vmul.f32 %v158, %v242
    %246 = vset.pattern.permute.xlu0 0
    %247 = vperm.xlu0 %246, %v116
    %v248 = vpop.permute.xlu0 %247
    %vm250 = vcmask 130048
    %v252 = vsel %vm250, %v115, 0
    %254 = vmatpush.msra.mxu0 0.0
    %255 = vmatpush.msra.mxu0 0.0
    %256 = vmatpush.msra.mxu0 0.0
    %257 = vmatpush.msra.mxu0 0.0
    %258 = vmatpush.msra.mxu0 0.0
    %259 = vmatpush.msra.mxu0 0.0
    %260 = vmatpush.msra.mxu0 0.0
    %261 = vmatpush.msra.mxu0 0.0
    %262 = vmatpush.msra.mxu0 0.0
    %263 = vmatpush.msra.mxu0 0.0
    %264 = vmatpush.msra.mxu0 0.0
    %265 = vmatpush.msra.mxu0 0.0
    %266 = vmatpush.msra.mxu0 0.0
    %267 = vmatpush.msra.mxu0 0.0
    %268 = vmatpush.msra.mxu0 %v244
    %269 = vmatpush.msra.mxu0 %v243
    %270 = vmatmul.f32.gmra.mxu0 %v252
    %v271 = vpop.f32.mrf.mxu0
    %v272 = vadd.f32 %v248, %v271
    %273 = vdwg.mxu0
    %274 = vmatpush.msra.mxu0 0.0
    %275 = vmatpush.msra.mxu0 0.0
    %276 = vmatpush.msra.mxu0 0.0
    %277 = vmatpush.msra.mxu0 0.0
    %278 = vmatpush.msra.mxu0 0.0
    %279 = vmatpush.msra.mxu0 0.0
    %280 = vmatpush.msra.mxu0 0.0
    %281 = vmatpush.msra.mxu0 0.0
    %282 = vmatpush.msra.mxu0 0.0
    %283 = vmatpush.msra.mxu0 0.0
    %284 = vmatpush.msra.mxu0 0.0
    %285 = vmatpush.msra.mxu0 0.0
    %286 = vmatpush.msra.mxu0 0.0
    %287 = vmatpush.msra.mxu0 0.0
    %288 = vmatpush.msra.mxu0 0.0
    %289 = vmatpush.msra.mxu0 %v110
    %290 = vmatmul.f32.gmra.mxu0 %v129
    %v291 = vpop.f32.mrf.mxu0
    %v292 = vadd.f32 %v120, %v291
    %293 = vmatmul.f32.gmra.mxu0 %v132
    %v294 = vpop.f32.mrf.mxu0
    %v295 = vadd.f32 %v125, %v294
    %296 = vdwg.mxu0
    %v297 = vmul.f32 %v292, 0.5
    %v298 = vmul.f32 %v295, 0.5
    %v299 = vmul.f32 %v292, 0.70710677
    %v300 = vmul.f32 %v295, 0.70710677
    %v301 = vmul.f32 %v299, %v299
    %v302 = vmin.f32 16.0, %v301
    %v303 = vmul.f32 %v302, 2.1237322e-06
    %v304 = vadd.f32 %v303, 0.00028619796
    %v305 = vmul.f32 %v302, %v304
    %v306 = vadd.f32 %v305, 0.0036580483
    %v307 = vmul.f32 %v302, %v306
    %v308 = vadd.f32 %v307, 0.05243302
    %v309 = vmul.f32 %v302, %v308
    %v310 = vadd.f32 %v309, 0.18741608
    %v311 = vmul.f32 %v302, %v310
    %v312 = vadd.f32 %v311, 1.1283791
    %v313 = vmul.f32 %v299, %v312
    %v314 = vmul.f32 %v302, 3.8918573e-05
    %v315 = vadd.f32 %v314, 0.001143296
    %v316 = vmul.f32 %v302, %v315
    %v317 = vadd.f32 %v316, 0.014752088
    %v318 = vmul.f32 %v302, %v317
    %v319 = vadd.f32 %v318, 0.112945676
    %v320 = vmul.f32 %v302, %v319
    %v321 = vadd.f32 %v320, 0.4994258
    %v322 = vmul.f32 %v302, %v321
    %v323 = vadd.f32 %v322, 1.0
    %v324 = vrcp.pop %v323
    %v325 = vmul.f32 %v323, %v324
    %v326 = vsub.f32 1.0, %v325
    %v327 = vmul.f32 %v324, %v326
    %v328 = vadd.f32 %v324, %v327
    %vm329 = vweird.f32 %v323
    %vm330 = vweird.f32 %v324
    %vm331 = vmor %vm329, %vm330
    %v332 = vsel %vm331, %v324, %v328
    %v333 = vand.u32 2147483647, %v323
    %vm334 = vcmp.eq.f32.partialorder %v333, 8.507059e+37
    %v335 = vand.u32 %v323, 2147483648
    %v336 = vor.u32 1.1754944e-38, %v335
    %v337 = vsel %vm334, %v336, %v332
    %v338 = vmul.f32 %v313, %v337
    %v339 = vmin.f32 %v338, 1.0
    %v340 = vmax.f32 %v339, -1.0
    %v341 = vmul.f32 %v300, %v300
    %v342 = vmin.f32 16.0, %v341
    %v343 = vmul.f32 %v342, 2.1237322e-06
    %v344 = vadd.f32 %v343, 0.00028619796
    %v345 = vmul.f32 %v342, %v344
    %v346 = vadd.f32 %v345, 0.0036580483
    %v347 = vmul.f32 %v342, %v346
    %v348 = vadd.f32 %v347, 0.05243302
    %v349 = vmul.f32 %v342, %v348
    %v350 = vadd.f32 %v349, 0.18741608
    %v351 = vmul.f32 %v342, %v350
    %v352 = vadd.f32 %v351, 1.1283791
    %v353 = vmul.f32 %v300, %v352
    %v354 = vmul.f32 %v342, 3.8918573e-05
    %v355 = vadd.f32 %v354, 0.001143296
    %v356 = vmul.f32 %v342, %v355
    %v357 = vadd.f32 %v356, 0.014752088
    %v358 = vmul.f32 %v342, %v357
    %v359 = vadd.f32 %v358, 0.112945676
    %v360 = vmul.f32 %v342, %v359
    %v361 = vadd.f32 %v360, 0.4994258
    %v362 = vmul.f32 %v342, %v361
    %v363 = vadd.f32 %v362, 1.0
    %v364 = vrcp.pop %v363
    %v365 = vmul.f32 %v363, %v364
    %v366 = vsub.f32 1.0, %v365
    %v367 = vmul.f32 %v364, %v366
    %v368 = vadd.f32 %v364, %v367
    %vm369 = vweird.f32 %v363
    %vm370 = vweird.f32 %v364
    %vm371 = vmor %vm369, %vm370
    %v372 = vsel %vm371, %v364, %v368
    %v373 = vand.u32 2147483647, %v363
    %vm374 = vcmp.eq.f32.partialorder %v373, 8.507059e+37
    %v375 = vand.u32 %v363, 2147483648
    %v376 = vor.u32 1.1754944e-38, %v375
    %v377 = vsel %vm374, %v376, %v372
    %v378 = vmul.f32 %v353, %v377
    %v379 = vmin.f32 %v378, 1.0
    %v380 = vmax.f32 %v379, -1.0
    %v381 = vadd.f32 %v340, 1.0
    %v382 = vadd.f32 %v380, 1.0
    %v383 = vmul.f32 %v297, %v381
    %v384 = vmul.f32 %v298, %v382
    %385 = vmatpush.msra.mxu0 0.0
    %386 = vmatpush.msra.mxu0 0.0
    %387 = vmatpush.msra.mxu0 0.0
    %388 = vmatpush.msra.mxu0 0.0
    %389 = vmatpush.msra.mxu0 0.0
    %390 = vmatpush.msra.mxu0 0.0
    %391 = vmatpush.msra.mxu0 0.0
    %392 = vmatpush.msra.mxu0 0.0
    %393 = vmatpush.msra.mxu0 0.0
    %394 = vmatpush.msra.mxu0 0.0
    %395 = vmatpush.msra.mxu0 0.0
    %396 = vmatpush.msra.mxu0 0.0
    %397 = vmatpush.msra.mxu0 0.0
    %398 = vmatpush.msra.mxu0 0.0
    %399 = vmatpush.msra.mxu0 %v384
    %400 = vmatpush.msra.mxu0 %v383
    %401 = vmatmul.f32.gmra.mxu0 %v252
    %v402 = vpop.f32.mrf.mxu0
    %v403 = vadd.f32 %v248, %v402
    %404 = vdwg.mxu0
    %v405 = vadd.f32 %v45, %v272
    %v406 = vadd.f32 %v46, %v403
    %v407 = vld [vmem:[%s7] sm:$0x1]
    %v408 = vld [vmem:[%s8] sm:$0x1]
    %v409 = vsel %vm49, %v405, 0.0
    %410 = vadd.xlane.f32.xlu0 %v409
    %v411 = vpop.xlane.xlu0 %410
    %v412 = vsel %vm49, %v406, 0.0
    %413 = vadd.xlane.f32.xlu0 %v412
    %v414 = vpop.xlane.xlu0 %413
    %v415 = vmul.f32 %v411, %v62
    %v416 = vmul.f32 %v414, %v62
    %v417 = vsub.f32 %v405, %v415
    %v418 = vsub.f32 %v406, %v416
    %v419 = vmul.f32 %v417, %v417
    %v420 = vmul.f32 %v418, %v418
    %v421 = vsel %vm49, %v419, 0.0
    %422 = vadd.xlane.f32.xlu0 %v421
    %v423 = vpop.xlane.xlu0 %422
    %v424 = vsel %vm49, %v420, 0.0
    %425 = vadd.xlane.f32.xlu0 %v424
    %v426 = vpop.xlane.xlu0 %425
    %v427 = vmul.f32 %v423, %v62
    %v428 = vmul.f32 %v426, %v62
    %v429 = vadd.f32 %v427, 1e-05
    %v430 = vadd.f32 %v428, 1e-05
    %v431 = vrsqrt.pop %v429
    %v432 = vmul.f32 %v431, %v429
    %v433 = vmul.f32 %v432, %v431
    %v434 = vmul.f32 0.5, %v433
    %v435 = vsub.f32 1.5, %v434
    %v436 = vmul.f32 %v431, %v435
    %vm437 = vweird.f32 %v429
    %vm438 = vweird.f32 %v431
    %vm439 = vmor %vm437, %vm438
    %v440 = vsel %vm439, %v431, %v436
    %v441 = vrsqrt.pop %v430
    %v442 = vmul.f32 %v441, %v430
    %v443 = vmul.f32 %v442, %v441
    %v444 = vmul.f32 0.5, %v443
    %v445 = vsub.f32 1.5, %v444
    %v446 = vmul.f32 %v441, %v445
    %vm447 = vweird.f32 %v430
    %vm448 = vweird.f32 %v441
    %vm449 = vmor %vm447, %vm448
    %v450 = vsel %vm449, %v441, %v446
    %v451 = vmul.f32 %v417, %v440
    %v452 = vmul.f32 %v418, %v450
    %v454 = vperm.slane %v407, 0
    %v456 = vmul.f32 %v451, %v454
    %v457 = vmul.f32 %v452, %v454
    %v459 = vperm.slane %v408, 0
    %v461 = vadd.f32 %v456, %v459
    %v462 = vadd.f32 %v457, %v459
    %v463 = vld [vmem:[%s9] sm:$0xff]
    %v464 = vld [vmem:[%s9 + $0x8] sm:$0xff]
    %v465 = vld [vmem:[%s9 + $0x10] sm:$0xff]
    %v466 = vld [vmem:[%s9 + $0x18] sm:$0xff]
    %v467 = vld [vmem:[%s10] sm:$0x1]
    %v469 = vperm.slane %v467, 0
    %v472 = vsel %vm49, %v461, 0
    %v475 = vsel %vm49, %v462, 0
    %477 = vmatpush.msra.mxu0 0.0
    %478 = vmatpush.msra.mxu0 0.0
    %479 = vmatpush.msra.mxu0 0.0
    %480 = vmatpush.msra.mxu0 0.0
    %481 = vmatpush.msra.mxu0 0.0
    %482 = vmatpush.msra.mxu0 0.0
    %483 = vmatpush.msra.mxu0 0.0
    %484 = vmatpush.msra.mxu0 0.0
    %485 = vmatpush.msra.mxu0 0.0
    %486 = vmatpush.msra.mxu0 0.0
    %487 = vmatpush.msra.mxu0 0.0
    %488 = vmatpush.msra.mxu0 0.0
    %489 = vmatpush.msra.mxu0 %v466
    %490 = vmatpush.msra.mxu0 %v465
    %491 = vmatpush.msra.mxu0 %v464
    %492 = vmatpush.msra.mxu0 %v463
    %493 = vmatmul.f32.gmra.mxu0 %v472
    %v494 = vpop.f32.mrf.mxu0
    %v495 = vadd.f32 %v469, %v494
    %496 = vmatmul.f32.gmra.mxu0 %v475
    %v497 = vpop.f32.mrf.mxu0
    %v498 = vadd.f32 %v469, %v497
    %499 = vdwg.mxu0
    %v500 = vmul.f32 %v495, 0.5
    %v501 = vmul.f32 %v498, 0.5
    %v502 = vmul.f32 %v495, 0.70710677
    %v503 = vmul.f32 %v498, 0.70710677
    %v504 = vmul.f32 %v502, %v502
    %v505 = vmin.f32 16.0, %v504
    %v506 = vmul.f32 %v505, 2.1237322e-06
    %v507 = vadd.f32 %v506, 0.00028619796
    %v508 = vmul.f32 %v505, %v507
    %v509 = vadd.f32 %v508, 0.0036580483
    %v510 = vmul.f32 %v505, %v509
    %v511 = vadd.f32 %v510, 0.05243302
    %v512 = vmul.f32 %v505, %v511
    %v513 = vadd.f32 %v512, 0.18741608
    %v514 = vmul.f32 %v505, %v513
    %v515 = vadd.f32 %v514, 1.1283791
    %v516 = vmul.f32 %v502, %v515
    %v517 = vmul.f32 %v505, 3.8918573e-05
    %v518 = vadd.f32 %v517, 0.001143296
    %v519 = vmul.f32 %v505, %v518
    %v520 = vadd.f32 %v519, 0.014752088
    %v521 = vmul.f32 %v505, %v520
    %v522 = vadd.f32 %v521, 0.112945676
    %v523 = vmul.f32 %v505, %v522
    %v524 = vadd.f32 %v523, 0.4994258
    %v525 = vmul.f32 %v505, %v524
    %v526 = vadd.f32 %v525, 1.0
    %v527 = vrcp.pop %v526
    %v528 = vmul.f32 %v526, %v527
    %v529 = vsub.f32 1.0, %v528
    %v530 = vmul.f32 %v527, %v529
    %v531 = vadd.f32 %v527, %v530
    %vm532 = vweird.f32 %v526
    %vm533 = vweird.f32 %v527
    %vm534 = vmor %vm532, %vm533
    %v535 = vsel %vm534, %v527, %v531
    %v536 = vand.u32 2147483647, %v526
    %vm537 = vcmp.eq.f32.partialorder %v536, 8.507059e+37
    %v538 = vand.u32 %v526, 2147483648
    %v539 = vor.u32 1.1754944e-38, %v538
    %v540 = vsel %vm537, %v539, %v535
    %v541 = vmul.f32 %v516, %v540
    %v542 = vmin.f32 %v541, 1.0
    %v543 = vmax.f32 %v542, -1.0
    %v544 = vmul.f32 %v503, %v503
    %v545 = vmin.f32 16.0, %v544
    %v546 = vmul.f32 %v545, 2.1237322e-06
    %v547 = vadd.f32 %v546, 0.00028619796
    %v548 = vmul.f32 %v545, %v547
    %v549 = vadd.f32 %v548, 0.0036580483
    %v550 = vmul.f32 %v545, %v549
    %v551 = vadd.f32 %v550, 0.05243302
    %v552 = vmul.f32 %v545, %v551
    %v553 = vadd.f32 %v552, 0.18741608
    %v554 = vmul.f32 %v545, %v553
    %v555 = vadd.f32 %v554, 1.1283791
    %v556 = vmul.f32 %v503, %v555
    %v557 = vmul.f32 %v545, 3.8918573e-05
    %v558 = vadd.f32 %v557, 0.001143296
    %v559 = vmul.f32 %v545, %v558
    %v560 = vadd.f32 %v559, 0.014752088
    %v561 = vmul.f32 %v545, %v560
    %v562 = vadd.f32 %v561, 0.112945676
    %v563 = vmul.f32 %v545, %v562
    %v564 = vadd.f32 %v563, 0.4994258
    %v565 = vmul.f32 %v545, %v564
    %v566 = vadd.f32 %v565, 1.0
    %v567 = vrcp.pop %v566
    %v568 = vmul.f32 %v566, %v567
    %v569 = vsub.f32 1.0, %v568
    %v570 = vmul.f32 %v567, %v569
    %v571 = vadd.f32 %v567, %v570
    %vm572 = vweird.f32 %v566
    %vm573 = vweird.f32 %v567
    %vm574 = vmor %vm572, %vm573
    %v575 = vsel %vm574, %v567, %v571
    %v576 = vand.u32 2147483647, %v566
    %vm577 = vcmp.eq.f32.partialorder %v576, 8.507059e+37
    %v578 = vand.u32 %v566, 2147483648
    %v579 = vor.u32 1.1754944e-38, %v578
    %v580 = vsel %vm577, %v579, %v575
    %v581 = vmul.f32 %v556, %v580
    %v582 = vmin.f32 %v581, 1.0
    %v583 = vmax.f32 %v582, -1.0
    %v584 = vadd.f32 %v543, 1.0
    %v585 = vadd.f32 %v583, 1.0
    %v586 = vmul.f32 %v500, %v584
    %v587 = vmul.f32 %v501, %v585
    %v588 = vld [vmem:[%s11] sm:$0xff]
    %v589 = vld [vmem:[%s11 + $0x8] sm:$0xff]
    %v590 = vld [vmem:[%s11 + $0x10] sm:$0xff]
    %v591 = vld [vmem:[%s11 + $0x18] sm:$0xff]
    %v592 = vld [vmem:[%s11 + $0x20] sm:$0xff]
    %v593 = vld [vmem:[%s11 + $0x28] sm:$0xff]
    %v594 = vld [vmem:[%s11 + $0x30] sm:$0xff]
    %v595 = vld [vmem:[%s11 + $0x38] sm:$0xff]
    %v596 = vld [vmem:[%s12] sm:$0x1]
    %v598 = vperm.slane %v596, 0
    %vm600 = vcmask 523264
    %v602 = vsel %vm600, %v586, 0
    %v605 = vsel %vm600, %v587, 0
    %607 = vmatpush.msra.mxu0 0.0
    %608 = vmatpush.msra.mxu0 0.0
    %609 = vmatpush.msra.mxu0 0.0
    %610 = vmatpush.msra.mxu0 0.0
    %611 = vmatpush.msra.mxu0 0.0
    %612 = vmatpush.msra.mxu0 0.0
    %613 = vmatpush.msra.mxu0 0.0
    %614 = vmatpush.msra.mxu0 0.0
    %615 = vmatpush.msra.mxu0 %v595
    %616 = vmatpush.msra.mxu0 %v594
    %617 = vmatpush.msra.mxu0 %v593
    %618 = vmatpush.msra.mxu0 %v592
    %619 = vmatpush.msra.mxu0 %v591
    %620 = vmatpush.msra.mxu0 %v590
    %621 = vmatpush.msra.mxu0 %v589
    %622 = vmatpush.msra.mxu0 %v588
    %623 = vmatmul.f32.gmra.mxu0 %v602
    %v624 = vpop.f32.mrf.mxu0
    %v625 = vadd.f32 %v598, %v624
    %626 = vmatmul.f32.gmra.mxu0 %v605
    %v627 = vpop.f32.mrf.mxu0
    %v628 = vadd.f32 %v598, %v627
    %629 = vdwg.mxu0
    %v630 = vadd.f32 %v405, %v625
    %v631 = vadd.f32 %v406, %v628
    %632 = vst.msk [vmem:[#allocation2] sm:$0xff] %vm49, %v630
    %633 = vst.msk [vmem:[#allocation2 + $0x8] sm:$0xff] %vm49, %v631
    // Predicated region
    $region54: #{tpu_custom_call.1} parent=1 // pred_check
      _
    $region55: #{tpu_custom_call.1} parent=1 // pred_check_branch
      %635 = sbr.rel (0) target = $region57
    $region56: #{tpu_custom_call.1} parent=1 // pred_region
      %637 = vsyncadd [#allocation3], 0
      %s638 = sshll.u32 [#allocation2], 4
      %s639 = int_to_ptr.vmem [resolvable:$true] %s638
      %s640 = sshll.u32 %s13, 4
      %s641 = int_to_ptr.hbm [resolvable:$true] %s640
      %646 = dma.vmem_to_hbm [thread:$0]  %s639, 256, %s641, [#allocation3], 128, 128, 8
    $region57: #{tpu_custom_call.1} parent=1 // pred_fallthru
      _
    // Predicated region
    $region58: #{tpu_custom_call.1} parent=1 // pred_check
      _
    $region59: #{tpu_custom_call.1} parent=1 // pred_check_branch
      %648 = sbr.rel (0) target = $region61
    $region60: #{tpu_custom_call.1} parent=1 // pred_region
      %650 = dma.done [#allocation3], 256
    $region61: #{tpu_custom_call.1} parent=1 // pred_fallthru
      _
    %651 = vsyncpa [#allocation3], 1

</llo_original>
